<compile_context>
chip_gen: v6e
topology: v6e:2x2x1
jax: 0.10.0
libtpu: 0.0.40
codegen_flags: <defaults>
</compile_context>

<pallas_src>
import math

import jax
import jax.numpy as jnp
import numpy as np
from jax.experimental import pallas as pl
from jax.experimental.pallas import tpu as pltpu

# ---- small, module-consistent hyperparameters (synthetic demo sizes) --------
BATCH = 2
MAX_LENGTH = 8          # module default 512; shrunk for a small runnable demo
EMBEDDING_DIM = 128     # module default 256; kept a multiple of 128 so gather
                        # destinations are lane-aligned (as at real sizes)
VOCAB_SIZE = 1000       # module default 129000; shrunk for a small runnable demo
OUTPUT_DIM = 9
H1, H2, H3 = 512, 256, 128
FLAT_DIM = MAX_LENGTH * EMBEDDING_DIM
OUT_PAD = 128           # lane-pad the 9-wide head to a full 128-lane store

# Tokens (rows of the flattened embedding) consumed per grid step.
# Demo: 2 tokens -> K-tile of 256 rows, 4 grid steps (exercises the pipeline).
# Real-size guidance is in the header comment above.
TOKENS_PER_TILE = 2


def mlp_kernel(ids_ref,                       # SMEM  [B, L] int32 (scalar prefetch)
               emb_hbm,                       # HBM   [V, D] f32 (pl.ANY, manual DMA)
               w1_ref, b1_ref,                # VMEM  [TK, H1] bf16 tile, [1, H1] f32
               w2_ref, b2_ref,                # VMEM  [H1, H2] bf16,      [1, H2] f32
               w3_ref, b3_ref,                # VMEM  [H2, H3] bf16,      [1, H3] f32
               w4_ref, b4_ref,                # VMEM  [H3, OUT_PAD] bf16, [1, OUT_PAD] f32
               out_ref,                       # VMEM  [B, OUT_PAD] f32
               x_buf,                         # VMEM  [2, B, LPT*D] f32 (double-buffered gather)
               acc_ref,                       # VMEM  [B, H1] f32 FC1 accumulator
               gather_sem):                   # DMA sems [2, LPT*B]
    k = pl.program_id(0)
    nk = pl.num_programs(0)
    B = acc_ref.shape[0]
    D = emb_hbm.shape[1]
    TK = x_buf.shape[2]
    LPT = TK // D
    slot = k % 2

    def issue_gather(step, to_slot):
        # LPT*B small row DMAs; each row lands at its flattened position,
        # lane-aligned (j*D is a static multiple of 128).
        for j in range(LPT):
            for b in range(B):
                tok = ids_ref[b, step * LPT + j]
                pltpu.make_async_copy(
                    emb_hbm.at[tok],
                    x_buf.at[to_slot, b, pl.ds(j * D, D)],
                    gather_sem.at[to_slot, j * B + b],
                ).start()

    # 1) Prime slot 0 and seed the accumulator with b1 on the first K-tile.
    @pl.when(k == 0)
    def _():
        issue_gather(0, 0)
        acc_ref[...] = jnp.broadcast_to(b1_ref[...], acc_ref.shape)

    # 2) Prefetch the NEXT tile's embedding rows into the other slot; these
    #    hide behind this step's W1-tile DMA + matmul.
    @pl.when(k + 1 < nk)
    def _():
        issue_gather(k + 1, 1 - slot)

    # 3) Wait only on the slot being consumed (dummy-src descriptors carry the
    #    same shape/dtype, hence the correct byte counts for the sem waits).
    for j in range(LPT):
        for b in range(B):
            pltpu.make_async_copy(
                emb_hbm.at[0],
                x_buf.at[slot, b, pl.ds(j * D, D)],
                gather_sem.at[slot, j * B + b],
            ).wait()

    # 4) One MXU stream per step: (B, TK) @ (TK, H1), f32 accumulation.
    x_tile = x_buf[slot].astype(jnp.bfloat16)            # single cast per tile
    acc_ref[...] += jnp.dot(x_tile, w1_ref[...],
                            preferred_element_type=jnp.float32)

    # 5) Last K-tile: ReLU + FC2..FC4, lane-dense output store.
    @pl.when(k == nk - 1)
    def _():
        h = jnp.maximum(acc_ref[...], 0.0)               # b1 already folded in
        h = jnp.maximum(
            jnp.dot(h.astype(jnp.bfloat16), w2_ref[...],
                    preferred_element_type=jnp.float32) + b2_ref[...], 0.0)
        h = jnp.maximum(
            jnp.dot(h.astype(jnp.bfloat16), w3_ref[...],
                    preferred_element_type=jnp.float32) + b3_ref[...], 0.0)
        y = jnp.dot(h.astype(jnp.bfloat16), w4_ref[...],
                    preferred_element_type=jnp.float32) + b4_ref[...]
        out_ref[...] = y.astype(out_ref.dtype)


def _vmem_limit_bytes():
    # ~3/4 of physical VMEM, clamped to [32 MiB, 96 MiB]:
    #   v5e/v6e (128 MiB) -> 96 MiB; v7x (64 MiB) -> 48 MiB.
    try:
        cap = pltpu.get_tpu_info().vmem_capacity_bytes
    except Exception:
        cap = 64 * 1024 * 1024
    return int(min(96 * 1024 * 1024, max(32 * 1024 * 1024, (cap * 3) // 4)))


def mlp_classifier_forward(input_ids, params, *, tokens_per_tile=TOKENS_PER_TILE):
    emb, (w1, b1), (w2, b2), (w3, b3), (w4, b4) = params   # weights already (in, out), bf16
    B, L = input_ids.shape
    V, D = emb.shape
    K = L * D
    assert L % tokens_per_tile == 0
    LPT = tokens_per_tile
    TK = LPT * D
    NK = L // LPT

    # Clamp ids: VMEM/HBM refs have no runtime bounds check.
    ids = jnp.clip(input_ids.astype(jnp.int32), 0, V - 1)

    flops = 2 * B * (K * H1 + H1 * H2 + H2 * H3 + H3 * OUT_PAD)
    bytes_accessed = (B * L * 4                                   # token ids
                      + B * L * D * 4                             # gathered emb rows
                      + (K * H1 + H1 * H2 + H2 * H3 + H3 * OUT_PAD) * 2   # bf16 weights
                      + (H1 + H2 + H3 + OUT_PAD) * 4              # f32 biases
                      + B * OUT_PAD * 4)                          # output

    grid_spec = pltpu.PrefetchScalarGridSpec(
        num_scalar_prefetch=1,                 # ids -> SMEM, visible to index maps & kernel
        grid=(NK,),
        in_specs=[
            pl.BlockSpec(memory_space=pl.ANY),                        # emb stays in HBM
            pl.BlockSpec((TK, H1), lambda k, ids: (k, 0)),            # W1 K-tile (streamed)
            pl.BlockSpec((1, H1), lambda k, ids: (0, 0)),             # b1
            pl.BlockSpec((H1, H2), lambda k, ids: (0, 0)),            # W2 (fetched once)
            pl.BlockSpec((1, H2), lambda k, ids: (0, 0)),             # b2
            pl.BlockSpec((H2, H3), lambda k, ids: (0, 0)),            # W3
            pl.BlockSpec((1, H3), lambda k, ids: (0, 0)),             # b3
            pl.BlockSpec((H3, OUT_PAD), lambda k, ids: (0, 0)),       # W4 (lane-padded)
            pl.BlockSpec((1, OUT_PAD), lambda k, ids: (0, 0)),        # b4
        ],
        out_specs=pl.BlockSpec((B, OUT_PAD), lambda k, ids: (0, 0)),
        scratch_shapes=[
            pltpu.VMEM((2, B, TK), jnp.float32),      # double-buffered flat gather dest
            pltpu.VMEM((B, H1), jnp.float32),         # FC1 accumulator
            pltpu.SemaphoreType.DMA((2, LPT * B)),    # one sem per gathered row per slot
        ],
    )

    out = pl.pallas_call(
        mlp_kernel,
        out_shape=jax.ShapeDtypeStruct((B, OUT_PAD), jnp.float32),
        grid_spec=grid_spec,
        compiler_params=pltpu.CompilerParams(
            dimension_semantics=("arbitrary",),        # K axis is a reduction (carried acc)
            vmem_limit_bytes=_vmem_limit_bytes(),
        ),
        cost_estimate=pl.CostEstimate(flops=flops, transcendentals=0,
                                      bytes_accessed=bytes_accessed),
    )(ids, emb, w1, b1, w2, b2, w3, b3, w4, b4)

    return out[:, :OUTPUT_DIM]                 # drop the lane padding of the 9-wide head


# ---- deterministic parameter initialization (mirrors module __init__) -------
def _xavier_uniform_t(key, in_dim, out_dim):
    # xavier_uniform is symmetric in (fan_in, fan_out); generate directly in
    # (in, out) layout so no per-call transpose is ever needed.
    limit = math.sqrt(6.0 / (in_dim + out_dim))
    return jax.random.uniform(key, (in_dim, out_dim), jnp.float32, -limit, limit)


def init_params(key):
    k_emb, k1, k2, k3, k4 = jax.random.split(key, 5)
    emb = jax.random.normal(k_emb, (VOCAB_SIZE, EMBEDDING_DIM), jnp.float32)  # nn.Embedding: N(0,1)
    w1 = _xavier_uniform_t(k1, FLAT_DIM, H1).astype(jnp.bfloat16)
    w2 = _xavier_uniform_t(k2, H1, H2).astype(jnp.bfloat16)
    w3 = _xavier_uniform_t(k3, H2, H3).astype(jnp.bfloat16)
    w4 = _xavier_uniform_t(k4, H3, OUTPUT_DIM).astype(jnp.bfloat16)
    w4 = jnp.zeros((H3, OUT_PAD), jnp.bfloat16).at[:, :OUTPUT_DIM].set(w4)   # lane-pad head
    bias = lambda n: jnp.zeros((1, n), jnp.float32)
    return emb, (w1, bias(H1)), (w2, bias(H2)), (w3, bias(H3)), (w4, bias(OUT_PAD))


def reference_forward(input_ids, params):
    # Same math as the PyTorch module with bf16 weights / bf16 matmul operands
    # and f32 accumulation (identical quantization choice as the kernel).
    emb, (w1, b1), (w2, b2), (w3, b3), (w4, b4) = params
    B = input_ids.shape[0]
    x = emb[input_ids].reshape(B, -1).astype(jnp.bfloat16)
    h = jnp.maximum(jnp.dot(x, w1, preferred_element_type=jnp.float32) + b1, 0.0)
    h = jnp.maximum(jnp.dot(h.astype(jnp.bfloat16), w2,
                            preferred_element_type=jnp.float32) + b2, 0.0)
    h = jnp.maximum(jnp.dot(h.astype(jnp.bfloat16), w3,
                            preferred_element_type=jnp.float32) + b3, 0.0)
    y = jnp.dot(h.astype(jnp.bfloat16), w4,
                preferred_element_type=jnp.float32) + b4
    return y[:, :OUTPUT_DIM]


if __name__ == "__main__":
    key = jax.random.PRNGKey(0)
    k_ids, k_params = jax.random.split(key)
    input_ids = jax.random.randint(k_ids, (BATCH, MAX_LENGTH), 0, VOCAB_SIZE, jnp.int32)
    params = init_params(k_params)

    out = mlp_classifier_forward(input_ids, params)
    out = jax.block_until_ready(out)

    ref = reference_forward(input_ids, params)
    assert out.shape == (BATCH, OUTPUT_DIM)
    np.testing.assert_allclose(np.asarray(out), np.asarray(ref), rtol=2e-3, atol=2e-3)

    print("KERNEL_OK")
</pallas_src>

<mosaic_0001>
module attributes {stable_mosaic.version = 11 : i64} {
  func.func @mlp_kernel(%arg0: i32, %arg1: memref<2x8xi32, #tpu.memory_space<smem>>, %arg2: memref<1000x128xf32, #tpu.memory_space<any>>, %arg3: memref<256x512xbf16, #tpu.memory_space<vmem>>, %arg4: memref<1x512xf32, #tpu.memory_space<vmem>>, %arg5: memref<512x256xbf16, #tpu.memory_space<vmem>>, %arg6: memref<1x256xf32, #tpu.memory_space<vmem>>, %arg7: memref<256x128xbf16, #tpu.memory_space<vmem>>, %arg8: memref<1x128xf32, #tpu.memory_space<vmem>>, %arg9: memref<128x128xbf16, #tpu.memory_space<vmem>>, %arg10: memref<1x128xf32, #tpu.memory_space<vmem>>, %arg11: memref<2x128xf32, #tpu.memory_space<vmem>>, %arg12: memref<2x2x256xf32, #tpu.memory_space<vmem>>, %arg13: memref<2x512xf32, #tpu.memory_space<vmem>>, %arg14: memref<2x4x!tpu.dma_semaphore, #tpu.memory_space<semaphore_mem>>) attributes {dimension_semantics = [#tpu.dimension_semantics<arbitrary>], iteration_bounds = array<i64: 4>, scalar_prefetch = 1 : i64, scratch_operands = 3 : i64, tpu.core_type = #tpu.core_type<tc>, window_params = [{}, {transform_indices = @transform_1, window_bounds = array<i64: 256, 512>}, {pipeline_mode = #tpu.pipeline_mode<synchronous>, transform_indices = @transform_2, window_bounds = array<i64: 1, 512>}, {pipeline_mode = #tpu.pipeline_mode<synchronous>, transform_indices = @transform_3, window_bounds = array<i64: 512, 256>}, {pipeline_mode = #tpu.pipeline_mode<synchronous>, transform_indices = @transform_4, window_bounds = array<i64: 1, 256>}, {pipeline_mode = #tpu.pipeline_mode<synchronous>, transform_indices = @transform_5, window_bounds = array<i64: 256, 128>}, {pipeline_mode = #tpu.pipeline_mode<synchronous>, transform_indices = @transform_6, window_bounds = array<i64: 1, 128>}, {pipeline_mode = #tpu.pipeline_mode<synchronous>, transform_indices = @transform_7, window_bounds = array<i64: 128, 128>}, {pipeline_mode = #tpu.pipeline_mode<synchronous>, transform_indices = @transform_8, window_bounds = array<i64: 1, 128>}, {pipeline_mode = #tpu.pipeline_mode<synchronous>, transform_indices = @transform_9, window_bounds = array<i64: 2, 128>}]} {
    %c2_i32 = arith.constant 2 : i32
    %c0_i32 = arith.constant 0 : i32
    %0 = arith.cmpi eq, %c2_i32, %c0_i32 : i32
    %c1_i32 = arith.constant 1 : i32
    %1 = arith.select %0, %c1_i32, %c2_i32 : i32
    %2 = arith.remsi %arg0, %1 : i32
    %c0_i32_0 = arith.constant 0 : i32
    %3 = arith.cmpi ne, %2, %c0_i32_0 : i32
    %c0_i32_1 = arith.constant 0 : i32
    %4 = arith.cmpi slt, %2, %c0_i32_1 : i32
    %c0_i32_2 = arith.constant 0 : i32
    %5 = arith.cmpi slt, %1, %c0_i32_2 : i32
    %6 = arith.xori %4, %5 : i1
    %7 = arith.andi %6, %3 : i1
    %8 = arith.addi %2, %1 : i32
    %9 = arith.select %7, %8, %2 : i32
    %c0_i32_3 = arith.constant 0 : i32
    %10 = arith.cmpi eq, %arg0, %c0_i32_3 : i32
    %11 = arith.extui %10 : i1 to i32
    %c0_i32_4 = arith.constant 0 : i32
    %12 = arith.cmpi ne, %11, %c0_i32_4 : i32
    scf.if %12 {
      %c0_34 = arith.constant 0 : index
      %c0_35 = arith.constant 0 : index
      %53 = memref.load %arg1[%c0_34, %c0_35] : memref<2x8xi32, #tpu.memory_space<smem>>
      %c0_i32_36 = arith.constant 0 : i32
      %c0_i32_37 = arith.constant 0 : i32
      %c0_i32_38 = arith.constant 0 : i32
      %c0_i32_39 = arith.constant 0 : i32
      %c0_i32_40 = arith.constant 0 : i32
      %54 = tpu.memref_slice %arg2[%53, %c0_i32_40] : memref<1000x128xf32, #tpu.memory_space<any>> -> memref<1x128xf32, #tpu.memory_space<any>>
      %55 = tpu.memref_squeeze %54 : memref<1x128xf32, #tpu.memory_space<any>> -> memref<128xf32, #tpu.memory_space<any>>
      %c0_i32_41 = arith.constant 0 : i32
      %56 = tpu.memref_slice %arg12[%c0_i32_36, %c0_i32_37, %c0_i32_41] : memref<2x2x256xf32, #tpu.memory_space<vmem>> -> memref<1x1x128xf32, #tpu.memory_space<vmem>>
      %57 = tpu.memref_squeeze %56 : memref<1x1x128xf32, #tpu.memory_space<vmem>> -> memref<128xf32, #tpu.memory_space<vmem>>
      %58 = tpu.memref_slice %arg14[%c0_i32_38, %c0_i32_39] : memref<2x4x!tpu.dma_semaphore, #tpu.memory_space<semaphore_mem>> -> memref<1x1x!tpu.dma_semaphore, #tpu.memory_space<semaphore_mem>>
      %59 = tpu.memref_squeeze %58 : memref<1x1x!tpu.dma_semaphore, #tpu.memory_space<semaphore_mem>> -> memref<!tpu.dma_semaphore, #tpu.memory_space<semaphore_mem>>
      tpu.enqueue_dma source(%55 : memref<128xf32, #tpu.memory_space<any>>) target(%57 : memref<128xf32, #tpu.memory_space<vmem>>) target_semaphore(%59 : memref<!tpu.dma_semaphore, #tpu.memory_space<semaphore_mem>>)
      %c1 = arith.constant 1 : index
      %c0_42 = arith.constant 0 : index
      %60 = memref.load %arg1[%c1, %c0_42] : memref<2x8xi32, #tpu.memory_space<smem>>
      %c0_i32_43 = arith.constant 0 : i32
      %c1_i32_44 = arith.constant 1 : i32
      %c0_i32_45 = arith.constant 0 : i32
      %c1_i32_46 = arith.constant 1 : i32
      %c0_i32_47 = arith.constant 0 : i32
      %61 = tpu.memref_slice %arg2[%60, %c0_i32_47] : memref<1000x128xf32, #tpu.memory_space<any>> -> memref<1x128xf32, #tpu.memory_space<any>>
      %62 = tpu.memref_squeeze %61 : memref<1x128xf32, #tpu.memory_space<any>> -> memref<128xf32, #tpu.memory_space<any>>
      %c0_i32_48 = arith.constant 0 : i32
      %63 = tpu.memref_slice %arg12[%c0_i32_43, %c1_i32_44, %c0_i32_48] : memref<2x2x256xf32, #tpu.memory_space<vmem>> -> memref<1x1x128xf32, #tpu.memory_space<vmem>>
      %64 = tpu.memref_squeeze %63 : memref<1x1x128xf32, #tpu.memory_space<vmem>> -> memref<128xf32, #tpu.memory_space<vmem>>
      %65 = tpu.memref_slice %arg14[%c0_i32_45, %c1_i32_46] : memref<2x4x!tpu.dma_semaphore, #tpu.memory_space<semaphore_mem>> -> memref<1x1x!tpu.dma_semaphore, #tpu.memory_space<semaphore_mem>>
      %66 = tpu.memref_squeeze %65 : memref<1x1x!tpu.dma_semaphore, #tpu.memory_space<semaphore_mem>> -> memref<!tpu.dma_semaphore, #tpu.memory_space<semaphore_mem>>
      tpu.enqueue_dma source(%62 : memref<128xf32, #tpu.memory_space<any>>) target(%64 : memref<128xf32, #tpu.memory_space<vmem>>) target_semaphore(%66 : memref<!tpu.dma_semaphore, #tpu.memory_space<semaphore_mem>>)
      %c0_49 = arith.constant 0 : index
      %c1_50 = arith.constant 1 : index
      %67 = memref.load %arg1[%c0_49, %c1_50] : memref<2x8xi32, #tpu.memory_space<smem>>
      %c0_i32_51 = arith.constant 0 : i32
      %c0_i32_52 = arith.constant 0 : i32
      %c0_i32_53 = arith.constant 0 : i32
      %c2_i32_54 = arith.constant 2 : i32
      %c0_i32_55 = arith.constant 0 : i32
      %68 = tpu.memref_slice %arg2[%67, %c0_i32_55] : memref<1000x128xf32, #tpu.memory_space<any>> -> memref<1x128xf32, #tpu.memory_space<any>>
      %69 = tpu.memref_squeeze %68 : memref<1x128xf32, #tpu.memory_space<any>> -> memref<128xf32, #tpu.memory_space<any>>
      %c128_i32_56 = arith.constant 128 : i32
      %70 = tpu.memref_slice %arg12[%c0_i32_51, %c0_i32_52, %c128_i32_56] : memref<2x2x256xf32, #tpu.memory_space<vmem>> -> memref<1x1x128xf32, #tpu.memory_space<vmem>>
      %71 = tpu.memref_squeeze %70 : memref<1x1x128xf32, #tpu.memory_space<vmem>> -> memref<128xf32, #tpu.memory_space<vmem>>
      %72 = tpu.memref_slice %arg14[%c0_i32_53, %c2_i32_54] : memref<2x4x!tpu.dma_semaphore, #tpu.memory_space<semaphore_mem>> -> memref<1x1x!tpu.dma_semaphore, #tpu.memory_space<semaphore_mem>>
      %73 = tpu.memref_squeeze %72 : memref<1x1x!tpu.dma_semaphore, #tpu.memory_space<semaphore_mem>> -> memref<!tpu.dma_semaphore, #tpu.memory_space<semaphore_mem>>
      tpu.enqueue_dma source(%69 : memref<128xf32, #tpu.memory_space<any>>) target(%71 : memref<128xf32, #tpu.memory_space<vmem>>) target_semaphore(%73 : memref<!tpu.dma_semaphore, #tpu.memory_space<semaphore_mem>>)
      %c1_57 = arith.constant 1 : index
      %c1_58 = arith.constant 1 : index
      %74 = memref.load %arg1[%c1_57, %c1_58] : memref<2x8xi32, #tpu.memory_space<smem>>
      %c0_i32_59 = arith.constant 0 : i32
      %c1_i32_60 = arith.constant 1 : i32
      %c0_i32_61 = arith.constant 0 : i32
      %c3_i32_62 = arith.constant 3 : i32
      %c0_i32_63 = arith.constant 0 : i32
      %75 = tpu.memref_slice %arg2[%74, %c0_i32_63] : memref<1000x128xf32, #tpu.memory_space<any>> -> memref<1x128xf32, #tpu.memory_space<any>>
      %76 = tpu.memref_squeeze %75 : memref<1x128xf32, #tpu.memory_space<any>> -> memref<128xf32, #tpu.memory_space<any>>
      %c128_i32_64 = arith.constant 128 : i32
      %77 = tpu.memref_slice %arg12[%c0_i32_59, %c1_i32_60, %c128_i32_64] : memref<2x2x256xf32, #tpu.memory_space<vmem>> -> memref<1x1x128xf32, #tpu.memory_space<vmem>>
      %78 = tpu.memref_squeeze %77 : memref<1x1x128xf32, #tpu.memory_space<vmem>> -> memref<128xf32, #tpu.memory_space<vmem>>
      %79 = tpu.memref_slice %arg14[%c0_i32_61, %c3_i32_62] : memref<2x4x!tpu.dma_semaphore, #tpu.memory_space<semaphore_mem>> -> memref<1x1x!tpu.dma_semaphore, #tpu.memory_space<semaphore_mem>>
      %80 = tpu.memref_squeeze %79 : memref<1x1x!tpu.dma_semaphore, #tpu.memory_space<semaphore_mem>> -> memref<!tpu.dma_semaphore, #tpu.memory_space<semaphore_mem>>
      tpu.enqueue_dma source(%76 : memref<128xf32, #tpu.memory_space<any>>) target(%78 : memref<128xf32, #tpu.memory_space<vmem>>) target_semaphore(%80 : memref<!tpu.dma_semaphore, #tpu.memory_space<semaphore_mem>>)
      %c0_65 = arith.constant 0 : index
      %c0_66 = arith.constant 0 : index
      %81 = vector.load %arg4[%c0_65, %c0_66] : memref<1x512xf32, #tpu.memory_space<vmem>>, vector<1x512xf32>
      %82 = vector.shape_cast %81 : vector<1x512xf32> to vector<1x512xf32>
      %83 = vector.broadcast %82 : vector<1x512xf32> to vector<2x512xf32>
      %c0_67 = arith.constant 0 : index
      %c0_68 = arith.constant 0 : index
      %84 = vector.load %arg13[%c0_67, %c0_68] : memref<2x512xf32, #tpu.memory_space<vmem>>, vector<2x512xf32>
      tpu.vector_store %arg13[%c0_67, %c0_68], %83 {strides = array<i32>} : memref<2x512xf32, #tpu.memory_space<vmem>>, vector<2x512xf32>,
    } else {
    }
    %c1_i32_5 = arith.constant 1 : i32
    %13 = arith.addi %arg0, %c1_i32_5 : i32
    %c4_i32 = arith.constant 4 : i32
    %14 = arith.cmpi slt, %13, %c4_i32 : i32
    %15 = arith.extui %14 : i1 to i32
    %c0_i32_6 = arith.constant 0 : i32
    %16 = arith.cmpi ne, %15, %c0_i32_6 : i32
    scf.if %16 {
      %c1_i32_34 = arith.constant 1 : i32
      %53 = arith.addi %arg0, %c1_i32_34 : i32
      %c1_i32_35 = arith.constant 1 : i32
      %54 = arith.subi %c1_i32_35, %9 : i32
      %c2_i32_36 = arith.constant 2 : i32
      %55 = arith.muli %53, %c2_i32_36 : i32
      %c0_i32_37 = arith.constant 0 : i32
      %56 = arith.addi %55, %c0_i32_37 : i32
      %c0_38 = arith.constant 0 : index
      %57 = arith.index_cast %56 : i32 to index
      %58 = memref.load %arg1[%c0_38, %57] : memref<2x8xi32, #tpu.memory_space<smem>>
      %c0_i32_39 = arith.constant 0 : i32
      %c0_i32_40 = arith.constant 0 : i32
      %c0_i32_41 = arith.constant 0 : i32
      %59 = tpu.memref_slice %arg2[%58, %c0_i32_41] : memref<1000x128xf32, #tpu.memory_space<any>> -> memref<1x128xf32, #tpu.memory_space<any>>
      %60 = tpu.memref_squeeze %59 : memref<1x128xf32, #tpu.memory_space<any>> -> memref<128xf32, #tpu.memory_space<any>>
      %c0_i32_42 = arith.constant 0 : i32
      %61 = tpu.memref_slice %arg12[%54, %c0_i32_39, %c0_i32_42] : memref<2x2x256xf32, #tpu.memory_space<vmem>> -> memref<1x1x128xf32, #tpu.memory_space<vmem>>
      %62 = tpu.memref_squeeze %61 : memref<1x1x128xf32, #tpu.memory_space<vmem>> -> memref<128xf32, #tpu.memory_space<vmem>>
      %63 = tpu.memref_slice %arg14[%54, %c0_i32_40] : memref<2x4x!tpu.dma_semaphore, #tpu.memory_space<semaphore_mem>> -> memref<1x1x!tpu.dma_semaphore, #tpu.memory_space<semaphore_mem>>
      %64 = tpu.memref_squeeze %63 : memref<1x1x!tpu.dma_semaphore, #tpu.memory_space<semaphore_mem>> -> memref<!tpu.dma_semaphore, #tpu.memory_space<semaphore_mem>>
      tpu.enqueue_dma source(%60 : memref<128xf32, #tpu.memory_space<any>>) target(%62 : memref<128xf32, #tpu.memory_space<vmem>>) target_semaphore(%64 : memref<!tpu.dma_semaphore, #tpu.memory_space<semaphore_mem>>)
      %c2_i32_43 = arith.constant 2 : i32
      %65 = arith.muli %53, %c2_i32_43 : i32
      %c0_i32_44 = arith.constant 0 : i32
      %66 = arith.addi %65, %c0_i32_44 : i32
      %c1 = arith.constant 1 : index
      %67 = arith.index_cast %66 : i32 to index
      %68 = memref.load %arg1[%c1, %67] : memref<2x8xi32, #tpu.memory_space<smem>>
      %c1_i32_45 = arith.constant 1 : i32
      %c1_i32_46 = arith.constant 1 : i32
      %c0_i32_47 = arith.constant 0 : i32
      %69 = tpu.memref_slice %arg2[%68, %c0_i32_47] : memref<1000x128xf32, #tpu.memory_space<any>> -> memref<1x128xf32, #tpu.memory_space<any>>
      %70 = tpu.memref_squeeze %69 : memref<1x128xf32, #tpu.memory_space<any>> -> memref<128xf32, #tpu.memory_space<any>>
      %c0_i32_48 = arith.constant 0 : i32
      %71 = tpu.memref_slice %arg12[%54, %c1_i32_45, %c0_i32_48] : memref<2x2x256xf32, #tpu.memory_space<vmem>> -> memref<1x1x128xf32, #tpu.memory_space<vmem>>
      %72 = tpu.memref_squeeze %71 : memref<1x1x128xf32, #tpu.memory_space<vmem>> -> memref<128xf32, #tpu.memory_space<vmem>>
      %73 = tpu.memref_slice %arg14[%54, %c1_i32_46] : memref<2x4x!tpu.dma_semaphore, #tpu.memory_space<semaphore_mem>> -> memref<1x1x!tpu.dma_semaphore, #tpu.memory_space<semaphore_mem>>
      %74 = tpu.memref_squeeze %73 : memref<1x1x!tpu.dma_semaphore, #tpu.memory_space<semaphore_mem>> -> memref<!tpu.dma_semaphore, #tpu.memory_space<semaphore_mem>>
      tpu.enqueue_dma source(%70 : memref<128xf32, #tpu.memory_space<any>>) target(%72 : memref<128xf32, #tpu.memory_space<vmem>>) target_semaphore(%74 : memref<!tpu.dma_semaphore, #tpu.memory_space<semaphore_mem>>)
      %c2_i32_49 = arith.constant 2 : i32
      %75 = arith.muli %53, %c2_i32_49 : i32
      %c1_i32_50 = arith.constant 1 : i32
      %76 = arith.addi %75, %c1_i32_50 : i32
      %c0_51 = arith.constant 0 : index
      %77 = arith.index_cast %76 : i32 to index
      %78 = memref.load %arg1[%c0_51, %77] : memref<2x8xi32, #tpu.memory_space<smem>>
      %c0_i32_52 = arith.constant 0 : i32
      %c2_i32_53 = arith.constant 2 : i32
      %c0_i32_54 = arith.constant 0 : i32
      %79 = tpu.memref_slice %arg2[%78, %c0_i32_54] : memref<1000x128xf32, #tpu.memory_space<any>> -> memref<1x128xf32, #tpu.memory_space<any>>
      %80 = tpu.memref_squeeze %79 : memref<1x128xf32, #tpu.memory_space<any>> -> memref<128xf32, #tpu.memory_space<any>>
      %c128_i32_55 = arith.constant 128 : i32
      %81 = tpu.memref_slice %arg12[%54, %c0_i32_52, %c128_i32_55] : memref<2x2x256xf32, #tpu.memory_space<vmem>> -> memref<1x1x128xf32, #tpu.memory_space<vmem>>
      %82 = tpu.memref_squeeze %81 : memref<1x1x128xf32, #tpu.memory_space<vmem>> -> memref<128xf32, #tpu.memory_space<vmem>>
      %83 = tpu.memref_slice %arg14[%54, %c2_i32_53] : memref<2x4x!tpu.dma_semaphore, #tpu.memory_space<semaphore_mem>> -> memref<1x1x!tpu.dma_semaphore, #tpu.memory_space<semaphore_mem>>
      %84 = tpu.memref_squeeze %83 : memref<1x1x!tpu.dma_semaphore, #tpu.memory_space<semaphore_mem>> -> memref<!tpu.dma_semaphore, #tpu.memory_space<semaphore_mem>>
      tpu.enqueue_dma source(%80 : memref<128xf32, #tpu.memory_space<any>>) target(%82 : memref<128xf32, #tpu.memory_space<vmem>>) target_semaphore(%84 : memref<!tpu.dma_semaphore, #tpu.memory_space<semaphore_mem>>)
      %c2_i32_56 = arith.constant 2 : i32
      %85 = arith.muli %53, %c2_i32_56 : i32
      %c1_i32_57 = arith.constant 1 : i32
      %86 = arith.addi %85, %c1_i32_57 : i32
      %c1_58 = arith.constant 1 : index
      %87 = arith.index_cast %86 : i32 to index
      %88 = memref.load %arg1[%c1_58, %87] : memref<2x8xi32, #tpu.memory_space<smem>>
      %c1_i32_59 = arith.constant 1 : i32
      %c3_i32_60 = arith.constant 3 : i32
      %c0_i32_61 = arith.constant 0 : i32
      %89 = tpu.memref_slice %arg2[%88, %c0_i32_61] : memref<1000x128xf32, #tpu.memory_space<any>> -> memref<1x128xf32, #tpu.memory_space<any>>
      %90 = tpu.memref_squeeze %89 : memref<1x128xf32, #tpu.memory_space<any>> -> memref<128xf32, #tpu.memory_space<any>>
      %c128_i32_62 = arith.constant 128 : i32
      %91 = tpu.memref_slice %arg12[%54, %c1_i32_59, %c128_i32_62] : memref<2x2x256xf32, #tpu.memory_space<vmem>> -> memref<1x1x128xf32, #tpu.memory_space<vmem>>
      %92 = tpu.memref_squeeze %91 : memref<1x1x128xf32, #tpu.memory_space<vmem>> -> memref<128xf32, #tpu.memory_space<vmem>>
      %93 = tpu.memref_slice %arg14[%54, %c3_i32_60] : memref<2x4x!tpu.dma_semaphore, #tpu.memory_space<semaphore_mem>> -> memref<1x1x!tpu.dma_semaphore, #tpu.memory_space<semaphore_mem>>
      %94 = tpu.memref_squeeze %93 : memref<1x1x!tpu.dma_semaphore, #tpu.memory_space<semaphore_mem>> -> memref<!tpu.dma_semaphore, #tpu.memory_space<semaphore_mem>>
      tpu.enqueue_dma source(%90 : memref<128xf32, #tpu.memory_space<any>>) target(%92 : memref<128xf32, #tpu.memory_space<vmem>>) target_semaphore(%94 : memref<!tpu.dma_semaphore, #tpu.memory_space<semaphore_mem>>)
    } else {
    }
    %c0_i32_7 = arith.constant 0 : i32
    %c0_i32_8 = arith.constant 0 : i32
    %c0_i32_9 = arith.constant 0 : i32
    %c0_i32_10 = arith.constant 0 : i32
    %17 = tpu.memref_slice %arg2[%c0_i32_7, %c0_i32_10] : memref<1000x128xf32, #tpu.memory_space<any>> -> memref<1x128xf32, #tpu.memory_space<any>>
    %18 = tpu.memref_squeeze %17 : memref<1x128xf32, #tpu.memory_space<any>> -> memref<128xf32, #tpu.memory_space<any>>
    %c0_i32_11 = arith.constant 0 : i32
    %19 = tpu.memref_slice %arg12[%9, %c0_i32_8, %c0_i32_11] : memref<2x2x256xf32, #tpu.memory_space<vmem>> -> memref<1x1x128xf32, #tpu.memory_space<vmem>>
    %20 = tpu.memref_squeeze %19 : memref<1x1x128xf32, #tpu.memory_space<vmem>> -> memref<128xf32, #tpu.memory_space<vmem>>
    %21 = tpu.memref_slice %arg14[%9, %c0_i32_9] : memref<2x4x!tpu.dma_semaphore, #tpu.memory_space<semaphore_mem>> -> memref<1x1x!tpu.dma_semaphore, #tpu.memory_space<semaphore_mem>>
    %22 = tpu.memref_squeeze %21 : memref<1x1x!tpu.dma_semaphore, #tpu.memory_space<semaphore_mem>> -> memref<!tpu.dma_semaphore, #tpu.memory_space<semaphore_mem>>
    tpu.wait_dma2 semaphore(%22 : memref<!tpu.dma_semaphore, #tpu.memory_space<semaphore_mem>>) src(%18 : memref<128xf32, #tpu.memory_space<any>>) dst(%20 : memref<128xf32, #tpu.memory_space<vmem>>)
    %c0_i32_12 = arith.constant 0 : i32
    %c1_i32_13 = arith.constant 1 : i32
    %c1_i32_14 = arith.constant 1 : i32
    %c0_i32_15 = arith.constant 0 : i32
    %23 = tpu.memref_slice %arg2[%c0_i32_12, %c0_i32_15] : memref<1000x128xf32, #tpu.memory_space<any>> -> memref<1x128xf32, #tpu.memory_space<any>>
    %24 = tpu.memref_squeeze %23 : memref<1x128xf32, #tpu.memory_space<any>> -> memref<128xf32, #tpu.memory_space<any>>
    %c0_i32_16 = arith.constant 0 : i32
    %25 = tpu.memref_slice %arg12[%9, %c1_i32_13, %c0_i32_16] : memref<2x2x256xf32, #tpu.memory_space<vmem>> -> memref<1x1x128xf32, #tpu.memory_space<vmem>>
    %26 = tpu.memref_squeeze %25 : memref<1x1x128xf32, #tpu.memory_space<vmem>> -> memref<128xf32, #tpu.memory_space<vmem>>
    %27 = tpu.memref_slice %arg14[%9, %c1_i32_14] : memref<2x4x!tpu.dma_semaphore, #tpu.memory_space<semaphore_mem>> -> memref<1x1x!tpu.dma_semaphore, #tpu.memory_space<semaphore_mem>>
    %28 = tpu.memref_squeeze %27 : memref<1x1x!tpu.dma_semaphore, #tpu.memory_space<semaphore_mem>> -> memref<!tpu.dma_semaphore, #tpu.memory_space<semaphore_mem>>
    tpu.wait_dma2 semaphore(%28 : memref<!tpu.dma_semaphore, #tpu.memory_space<semaphore_mem>>) src(%24 : memref<128xf32, #tpu.memory_space<any>>) dst(%26 : memref<128xf32, #tpu.memory_space<vmem>>)
    %c0_i32_17 = arith.constant 0 : i32
    %c0_i32_18 = arith.constant 0 : i32
    %c2_i32_19 = arith.constant 2 : i32
    %c0_i32_20 = arith.constant 0 : i32
    %29 = tpu.memref_slice %arg2[%c0_i32_17, %c0_i32_20] : memref<1000x128xf32, #tpu.memory_space<any>> -> memref<1x128xf32, #tpu.memory_space<any>>
    %30 = tpu.memref_squeeze %29 : memref<1x128xf32, #tpu.memory_space<any>> -> memref<128xf32, #tpu.memory_space<any>>
    %c128_i32 = arith.constant 128 : i32
    %31 = tpu.memref_slice %arg12[%9, %c0_i32_18, %c128_i32] : memref<2x2x256xf32, #tpu.memory_space<vmem>> -> memref<1x1x128xf32, #tpu.memory_space<vmem>>
    %32 = tpu.memref_squeeze %31 : memref<1x1x128xf32, #tpu.memory_space<vmem>> -> memref<128xf32, #tpu.memory_space<vmem>>
    %33 = tpu.memref_slice %arg14[%9, %c2_i32_19] : memref<2x4x!tpu.dma_semaphore, #tpu.memory_space<semaphore_mem>> -> memref<1x1x!tpu.dma_semaphore, #tpu.memory_space<semaphore_mem>>
    %34 = tpu.memref_squeeze %33 : memref<1x1x!tpu.dma_semaphore, #tpu.memory_space<semaphore_mem>> -> memref<!tpu.dma_semaphore, #tpu.memory_space<semaphore_mem>>
    tpu.wait_dma2 semaphore(%34 : memref<!tpu.dma_semaphore, #tpu.memory_space<semaphore_mem>>) src(%30 : memref<128xf32, #tpu.memory_space<any>>) dst(%32 : memref<128xf32, #tpu.memory_space<vmem>>)
    %c0_i32_21 = arith.constant 0 : i32
    %c1_i32_22 = arith.constant 1 : i32
    %c3_i32 = arith.constant 3 : i32
    %c0_i32_23 = arith.constant 0 : i32
    %35 = tpu.memref_slice %arg2[%c0_i32_21, %c0_i32_23] : memref<1000x128xf32, #tpu.memory_space<any>> -> memref<1x128xf32, #tpu.memory_space<any>>
    %36 = tpu.memref_squeeze %35 : memref<1x128xf32, #tpu.memory_space<any>> -> memref<128xf32, #tpu.memory_space<any>>
    %c128_i32_24 = arith.constant 128 : i32
    %37 = tpu.memref_slice %arg12[%9, %c1_i32_22, %c128_i32_24] : memref<2x2x256xf32, #tpu.memory_space<vmem>> -> memref<1x1x128xf32, #tpu.memory_space<vmem>>
    %38 = tpu.memref_squeeze %37 : memref<1x1x128xf32, #tpu.memory_space<vmem>> -> memref<128xf32, #tpu.memory_space<vmem>>
    %39 = tpu.memref_slice %arg14[%9, %c3_i32] : memref<2x4x!tpu.dma_semaphore, #tpu.memory_space<semaphore_mem>> -> memref<1x1x!tpu.dma_semaphore, #tpu.memory_space<semaphore_mem>>
    %40 = tpu.memref_squeeze %39 : memref<1x1x!tpu.dma_semaphore, #tpu.memory_space<semaphore_mem>> -> memref<!tpu.dma_semaphore, #tpu.memory_space<semaphore_mem>>
    tpu.wait_dma2 semaphore(%40 : memref<!tpu.dma_semaphore, #tpu.memory_space<semaphore_mem>>) src(%36 : memref<128xf32, #tpu.memory_space<any>>) dst(%38 : memref<128xf32, #tpu.memory_space<vmem>>)
    %41 = arith.index_cast %9 : i32 to index
    %c0 = arith.constant 0 : index
    %c0_25 = arith.constant 0 : index
    %42 = vector.load %arg12[%41, %c0, %c0_25] : memref<2x2x256xf32, #tpu.memory_space<vmem>>, vector<1x2x256xf32>
    %43 = vector.shape_cast %42 : vector<1x2x256xf32> to vector<2x256xf32>
    %44 = arith.truncf %43 : vector<2x256xf32> to vector<2x256xbf16>
    %c0_26 = arith.constant 0 : index
    %c0_27 = arith.constant 0 : index
    %45 = vector.load %arg13[%c0_26, %c0_27] : memref<2x512xf32, #tpu.memory_space<vmem>>, vector<2x512xf32>
    %c0_28 = arith.constant 0 : index
    %c0_29 = arith.constant 0 : index
    %46 = vector.load %arg3[%c0_28, %c0_29] : memref<256x512xbf16, #tpu.memory_space<vmem>>, vector<256x512xbf16>
    %cst = arith.constant dense<0.000000e+00> : vector<2x512xf32>
    %47 = tpu.matmul %44, %46, %cst {dimension_numbers = #tpu.dot_dimension_numbers<[1], [0], [0], [1], [0, 0, 1, 1], [], []>} : vector<2x256xbf16>, vector<256x512xbf16>, vector<2x512xf32> -> vector<2x512xf32>
    %48 = arith.addf %45, %47 : vector<2x512xf32>
    %c0_30 = arith.constant 0 : index
    %c0_31 = arith.constant 0 : index
    %49 = vector.load %arg13[%c0_30, %c0_31] : memref<2x512xf32, #tpu.memory_space<vmem>>, vector<2x512xf32>
    tpu.vector_store %arg13[%c0_30, %c0_31], %48 {strides = array<i32>} : memref<2x512xf32, #tpu.memory_space<vmem>>, vector<2x512xf32>,
    %c3_i32_32 = arith.constant 3 : i32
    %50 = arith.cmpi eq, %arg0, %c3_i32_32 : i32
    %51 = arith.extui %50 : i1 to i32
    %c0_i32_33 = arith.constant 0 : i32
    %52 = arith.cmpi ne, %51, %c0_i32_33 : i32
    scf.if %52 {
      %c0_34 = arith.constant 0 : index
      %c0_35 = arith.constant 0 : index
      %53 = vector.load %arg13[%c0_34, %c0_35] : memref<2x512xf32, #tpu.memory_space<vmem>>, vector<2x512xf32>
      %cst_36 = arith.constant 0.000000e+00 : f32
      %54 = vector.broadcast %cst_36 : f32 to vector<2x512xf32>
      %55 = arith.maximumf %53, %54 : vector<2x512xf32>
      %56 = arith.truncf %55 : vector<2x512xf32> to vector<2x512xbf16>
      %c0_37 = arith.constant 0 : index
      %c0_38 = arith.constant 0 : index
      %57 = vector.load %arg5[%c0_37, %c0_38] : memref<512x256xbf16, #tpu.memory_space<vmem>>, vector<512x256xbf16>
      %cst_39 = arith.constant dense<0.000000e+00> : vector<2x256xf32>
      %58 = tpu.matmul %56, %57, %cst_39 {dimension_numbers = #tpu.dot_dimension_numbers<[1], [0], [0], [1], [0, 0, 1, 1], [], []>} : vector<2x512xbf16>, vector<512x256xbf16>, vector<2x256xf32> -> vector<2x256xf32>
      %c0_40 = arith.constant 0 : index
      %c0_41 = arith.constant 0 : index
      %59 = vector.load %arg6[%c0_40, %c0_41] : memref<1x256xf32, #tpu.memory_space<vmem>>, vector<1x256xf32>
      %60 = vector.broadcast %59 : vector<1x256xf32> to vector<2x256xf32>
      %61 = arith.addf %58, %60 : vector<2x256xf32>
      %cst_42 = arith.constant 0.000000e+00 : f32
      %62 = vector.broadcast %cst_42 : f32 to vector<2x256xf32>
      %63 = arith.maximumf %61, %62 : vector<2x256xf32>
      %64 = arith.truncf %63 : vector<2x256xf32> to vector<2x256xbf16>
      %c0_43 = arith.constant 0 : index
      %c0_44 = arith.constant 0 : index
      %65 = vector.load %arg7[%c0_43, %c0_44] : memref<256x128xbf16, #tpu.memory_space<vmem>>, vector<256x128xbf16>
      %cst_45 = arith.constant dense<0.000000e+00> : vector<2x128xf32>
      %66 = tpu.matmul %64, %65, %cst_45 {dimension_numbers = #tpu.dot_dimension_numbers<[1], [0], [0], [1], [0, 0, 1, 1], [], []>} : vector<2x256xbf16>, vector<256x128xbf16>, vector<2x128xf32> -> vector<2x128xf32>
      %c0_46 = arith.constant 0 : index
      %c0_47 = arith.constant 0 : index
      %67 = vector.load %arg8[%c0_46, %c0_47] : memref<1x128xf32, #tpu.memory_space<vmem>>, vector<1x128xf32>
      %68 = vector.broadcast %67 : vector<1x128xf32> to vector<2x128xf32>
      %69 = arith.addf %66, %68 : vector<2x128xf32>
      %cst_48 = arith.constant 0.000000e+00 : f32
      %70 = vector.broadcast %cst_48 : f32 to vector<2x128xf32>
      %71 = arith.maximumf %69, %70 : vector<2x128xf32>
      %72 = arith.truncf %71 : vector<2x128xf32> to vector<2x128xbf16>
      %c0_49 = arith.constant 0 : index
      %c0_50 = arith.constant 0 : index
      %73 = vector.load %arg9[%c0_49, %c0_50] : memref<128x128xbf16, #tpu.memory_space<vmem>>, vector<128x128xbf16>
      %cst_51 = arith.constant dense<0.000000e+00> : vector<2x128xf32>
      %74 = tpu.matmul %72, %73, %cst_51 {dimension_numbers = #tpu.dot_dimension_numbers<[1], [0], [0], [1], [0, 0, 1, 1], [], []>} : vector<2x128xbf16>, vector<128x128xbf16>, vector<2x128xf32> -> vector<2x128xf32>
      %c0_52 = arith.constant 0 : index
      %c0_53 = arith.constant 0 : index
      %75 = vector.load %arg10[%c0_52, %c0_53] : memref<1x128xf32, #tpu.memory_space<vmem>>, vector<1x128xf32>
      %76 = vector.broadcast %75 : vector<1x128xf32> to vector<2x128xf32>
      %77 = arith.addf %74, %76 : vector<2x128xf32>
      %c0_54 = arith.constant 0 : index
      %c0_55 = arith.constant 0 : index
      %78 = vector.load %arg11[%c0_54, %c0_55] : memref<2x128xf32, #tpu.memory_space<vmem>>, vector<2x128xf32>
      tpu.vector_store %arg11[%c0_54, %c0_55], %77 {strides = array<i32>} : memref<2x128xf32, #tpu.memory_space<vmem>>, vector<2x128xf32>,
    } else {
    }
    return
  }
  func.func @transform_1(%arg0: i32, %arg1: memref<2x8xi32, #tpu.memory_space<smem>>) -> (i32, i32) {
    %c0_i32 = arith.constant 0 : i32
    %c0_i32_0 = arith.constant 0 : i32
    return %arg0, %c0_i32 : i32, i32
  }
  func.func @transform_2(%arg0: i32, %arg1: memref<2x8xi32, #tpu.memory_space<smem>>) -> (i32, i32) {
    %c0_i32 = arith.constant 0 : i32
    %c0_i32_0 = arith.constant 0 : i32
    %c0_i32_1 = arith.constant 0 : i32
    return %c0_i32, %c0_i32_0 : i32, i32
  }
  func.func @transform_3(%arg0: i32, %arg1: memref<2x8xi32, #tpu.memory_space<smem>>) -> (i32, i32) {
    %c0_i32 = arith.constant 0 : i32
    %c0_i32_0 = arith.constant 0 : i32
    %c0_i32_1 = arith.constant 0 : i32
    return %c0_i32, %c0_i32_0 : i32, i32
  }
  func.func @transform_4(%arg0: i32, %arg1: memref<2x8xi32, #tpu.memory_space<smem>>) -> (i32, i32) {
    %c0_i32 = arith.constant 0 : i32
    %c0_i32_0 = arith.constant 0 : i32
    %c0_i32_1 = arith.constant 0 : i32
    return %c0_i32, %c0_i32_0 : i32, i32
  }
  func.func @transform_5(%arg0: i32, %arg1: memref<2x8xi32, #tpu.memory_space<smem>>) -> (i32, i32) {
    %c0_i32 = arith.constant 0 : i32
    %c0_i32_0 = arith.constant 0 : i32
    %c0_i32_1 = arith.constant 0 : i32
    return %c0_i32, %c0_i32_0 : i32, i32
  }
  func.func @transform_6(%arg0: i32, %arg1: memref<2x8xi32, #tpu.memory_space<smem>>) -> (i32, i32) {
    %c0_i32 = arith.constant 0 : i32
    %c0_i32_0 = arith.constant 0 : i32
    %c0_i32_1 = arith.constant 0 : i32
    return %c0_i32, %c0_i32_0 : i32, i32
  }
  func.func @transform_7(%arg0: i32, %arg1: memref<2x8xi32, #tpu.memory_space<smem>>) -> (i32, i32) {
    %c0_i32 = arith.constant 0 : i32
    %c0_i32_0 = arith.constant 0 : i32
    %c0_i32_1 = arith.constant 0 : i32
    return %c0_i32, %c0_i32_0 : i32, i32
  }
  func.func @transform_8(%arg0: i32, %arg1: memref<2x8xi32, #tpu.memory_space<smem>>) -> (i32, i32) {
    %c0_i32 = arith.constant 0 : i32
    %c0_i32_0 = arith.constant 0 : i32
    %c0_i32_1 = arith.constant 0 : i32
    return %c0_i32, %c0_i32_0 : i32, i32
  }
  func.func @transform_9(%arg0: i32, %arg1: memref<2x8xi32, #tpu.memory_space<smem>>) -> (i32, i32) {
    %c0_i32 = arith.constant 0 : i32
    %c0_i32_0 = arith.constant 0 : i32
    %c0_i32_1 = arith.constant 0 : i32
    return %c0_i32, %c0_i32_0 : i32, i32
  }
}

</mosaic_0001>

<llo_original>
// kernel: tpu_custom_call.1
$region0: #{tpu_custom_call.1}
  #allocation0 [shape = 'u32[]', space=smem, size = 0x4, offset = 0x4, fixed_abs, tag = 'smem constant byte address 0x4 - core index']
  #allocation1 [shape = 'u32[144,128]{1,0:T(1,128)}', space=vmem, size = 0x12000, scoped, tag = 'internal scratch']
  #allocation2 [shape = 'f32[2,2,256]{2,1,0:T(2,128)}', space=vmem, size = 0x1000, scoped, tag = 'scratch operand']
  #allocation3 [shape = 'f32[2,512]{1,0:T(2,128)}', space=vmem, size = 0x1000, scoped, tag = 'scratch operand']
  #allocation4 [shape = 's32[8]{0}', space=sflag, size = 0x20, scoped, tag = 'scratch operand']
  #allocation5 [shape = 's32[1]{0}', space=sflag, size = 0x4, scoped, tag = 'scoped memory for tpu_custom_call.1']
  #allocation6 [shape = 'u8[1024]{0}', space=smem, size = 0x400, scoped, tag = 'prefetched SMEM operand 0']
  #allocation16 [shape = 's32[]', space=sflag, size = 0x4, offset = 0, fixed_abs, tag = 'sflag constant byte address 0x0 - dummy sync flag']
  #allocation17 [shape = 's32[]', space=sflag, size = 0x4, offset = 0, fixed_abs, tag = 'sflag constant byte address 0x0 - dummy sync flag']
  #allocation18 [shape = 'u32[]', space=smem, size = 0x4, offset = 0x44, fixed_abs, tag = 'smem constant byte address 0x44 - assertion arg 0']
  #allocation19 [shape = 'u32[]', space=smem, size = 0x4, offset = 0x48, fixed_abs, tag = 'smem constant byte address 0x48 - assertion arg 1']
  #allocation20 [shape = 's32[]', space=sflag, size = 0x4, offset = 0, fixed_abs, tag = 'sflag constant byte address 0x0 - dummy sync flag']
  #allocation21 [shape = 's32[]', space=sflag, size = 0x4, offset = 0, fixed_abs, tag = 'sflag constant byte address 0x0 - dummy sync flag']
  #allocation22 [shape = 's32[]', space=sflag, size = 0x4, offset = 0, fixed_abs, tag = 'sflag constant byte address 0x0 - dummy sync flag']
  #allocation23 [shape = 's32[]', space=sflag, size = 0x4, offset = 0, fixed_abs, tag = 'sflag constant byte address 0x0 - dummy sync flag']
  #allocation24 [shape = 's32[]', space=sflag, size = 0x4, offset = 0, fixed_abs, tag = 'sflag constant byte address 0x0 - dummy sync flag']
  #allocation25 [shape = 's32[]', space=sflag, size = 0x4, offset = 0, fixed_abs, tag = 'sflag constant byte address 0x0 - dummy sync flag']
  #allocation26 [shape = 's32[]', space=sflag, size = 0x4, offset = 0, fixed_abs, tag = 'sflag constant byte address 0x0 - dummy sync flag']
  #allocation27 [shape = 's32[]', space=sflag, size = 0x4, offset = 0, fixed_abs, tag = 'sflag constant byte address 0x0 - dummy sync flag']
  #allocation28 [shape = 's32[]', space=sflag, size = 0x4, offset = 0, fixed_abs, tag = 'sflag constant byte address 0x0 - dummy sync flag']
  #allocation29 [shape = 's32[]', space=sflag, size = 0x4, offset = 0, fixed_abs, tag = 'sflag constant byte address 0x0 - dummy sync flag']
  #allocation30 [shape = 's32[]', space=sflag, size = 0x4, offset = 0, fixed_abs, tag = 'sflag constant byte address 0x0 - dummy sync flag']
  #allocation31 [shape = 's32[]', space=sflag, size = 0x4, offset = 0, fixed_abs, tag = 'sflag constant byte address 0x0 - dummy sync flag']
  #allocation32 [shape = 's32[]', space=sflag, size = 0x4, offset = 0, fixed_abs, tag = 'sflag constant byte address 0x0 - dummy sync flag']
  #allocation33 [shape = 's32[]', space=sflag, size = 0x4, offset = 0, fixed_abs, tag = 'sflag constant byte address 0x0 - dummy sync flag']
  %s0 = inlined_call_operand.hbm [shape: s32[2,8], index: 0, kind: input, shape index: {}]
  %s1 = inlined_call_operand.hbm [shape: f32[1000,128], index: 1, kind: input, shape index: {}]
  %s2 = inlined_call_operand.hbm [shape: bf16[1024,512], index: 2, kind: input, shape index: {}]
  %s3 = inlined_call_operand.vmem [shape: f32[1,512], index: 3, kind: input, shape index: {}]
  %s4 = inlined_call_operand.hbm [shape: bf16[512,256], index: 4, kind: input, shape index: {}]
  %s5 = inlined_call_operand.vmem [shape: f32[1,256], index: 5, kind: input, shape index: {}]
  %s6 = inlined_call_operand.hbm [shape: bf16[256,128], index: 6, kind: input, shape index: {}]
  %s7 = inlined_call_operand.vmem [shape: f32[1,128], index: 7, kind: input, shape index: {}]
  %s8 = inlined_call_operand.hbm [shape: bf16[128,128], index: 8, kind: input, shape index: {}]
  %s9 = inlined_call_operand.vmem [shape: f32[1,128], index: 9, kind: input, shape index: {}]
  %s10 = inlined_call_operand.hbm [shape: f32[2,128], index: 10, kind: output, shape index: {}]
  %s11 = sld [smem:[#allocation0]]
  $region125: #{tpu_custom_call.1} parent=0
    _
  %s13 = ssub.s32 1, %s11
  %s14 = scalar_select 0, %s13, %s11
  %16 = dma.hbm_to_smem %s0, 32, [#allocation6], [#allocation5]
  %17 = dma.done [#allocation5], 32
  %18 = sfence
  $region1: #{tpu_custom_call.1} parent=0
    #allocation7 [shape = 'u8[524288]{0}', space=vmem, size = 0x80000, scoped, tag = 'input window, operand 2']
    #allocation8 [shape = 's32[2]{0}', space=sflag, size = 0x8, scoped, tag = 'scoped memory for tpu_custom_call.1']
    #allocation9 [shape = 's32[2]{0}', space=sflag, size = 0x8, scoped, tag = 'scoped memory for tpu_custom_call.1']
    #allocation10 [shape = 'u8[262144]{0}', space=vmem, size = 0x40000, scoped, tag = 'input window, operand 4, single buffered']
    #allocation11 [shape = 's32[1]{0}', space=sflag, size = 0x4, scoped, tag = 'scoped memory for tpu_custom_call.1']
    #allocation12 [shape = 'u8[65536]{0}', space=vmem, size = 0x10000, scoped, tag = 'input window, operand 6, single buffered']
    #allocation13 [shape = 'u8[32768]{0}', space=vmem, size = 0x8000, scoped, tag = 'input window, operand 8, single buffered']
    #allocation14 [shape = 's32[1]{0}', space=sflag, size = 0x4, scoped, tag = 'scoped memory for tpu_custom_call.1']
    #allocation15 [shape = 'u8[1024]{0}', space=vmem, size = 0x400, scoped, tag = 'output window, operand 0, single buffered']
    %19 = vsyncpa [#allocation8], 0
    %s20 = scalar_lea.sflag [#allocation8], 1
    %21 = vsyncpa %s20, 0
    %22 = vsyncpa [#allocation11], 0
    %23 = vsyncpa [#allocation14], 0
    %24 = vsyncpa [#allocation9], 0
    loop: start=0, step=1, limit=6
    $region2: #{tpu_custom_call.1} parent=1 // loop_pre_header
      _
    $region3: #{tpu_custom_call.1} parent=1 // loop_header
      %s26 = sphi 0, %s30
      %p27 = scmp.ge.s32.totalorder %s26, 6
      %s36 = sphi 0, %s38
      %s39 = sphi 0, %s36
      %s40 = sphi 0, %s39
      %s56 = sphi 0, %s40
      %s60 = sphi 0, %s60
      %s62 = sphi 0, %s60
      %s63 = sphi 0, %s62
      %s77 = sphi 0, %s63
      %s81 = sphi 0, %s81
      %s83 = sphi 0, %s81
      %s84 = sphi 0, %s83
      %s98 = sphi 0, %s84
      %s102 = sphi 0, %s102
      %s104 = sphi 0, %s102
      %s105 = sphi 0, %s104
      %s119 = sphi 0, %s105
      %s123 = sphi 0, %s123
      %s125 = sphi 0, %s123
      %s126 = sphi 0, %s125
      %s140 = sphi 0, %s126
      %s144 = sphi 0, %s144
      %s146 = sphi 0, %s144
      %s147 = sphi 0, %s146
      %s161 = sphi 0, %s147
      %s165 = sphi 0, %s165
      %s167 = sphi 0, %s165
      %s168 = sphi 0, %s167
      %s182 = sphi 0, %s168
      %s186 = sphi 0, %s186
      %s188 = sphi 0, %s186
      %s189 = sphi 0, %s188
      %s203 = sphi 0, %s189
      %s207 = sphi 0, %s207
      %s209 = sphi 0, %s207
      %s210 = sphi 0, %s209
      %s224 = sphi 0, %s210
    $region4: #{tpu_custom_call.1} parent=1 // loop_header_branch
      %29 = sbr.rel (%p27) target = $region8
    $region5: #{tpu_custom_call.1} parent=1 // loop_body
      %s31 = ssub.s32 %s26, 1
      %s32 = ssub.s32 %s26, 2
      %s33 = sadd.s32 %s26, 1
      %s34 = ssub.s32 %s26, %s33
      %p35 = scmp.eq.s32.totalorder %s34, 0
      %s37 = sadd.s32 %s36, 1
      %s38 = scalar_select %p35, %s36, %s37
      %p41 = pneg %p35
      %p42 = scmp.eq.s32.totalorder %s26, 3
      %p43 = por %p41, %p42
      %p44 = scmp.ne.s32.totalorder %s36, %s39
      %p45 = scmp.eq.s32.totalorder %s26, 0
      %p46 = por %p44, %p45
      %p47 = scmp.ne.s32.totalorder %s36, %s39
      %p48 = scmp.eq.s32.totalorder %s31, 3
      %p49 = por %p47, %p48
      %p50 = scmp.ne.s32.totalorder %s39, %s40
      %p51 = scmp.eq.s32.totalorder %s31, 0
      %p52 = por %p50, %p51
      %p53 = scmp.ne.s32.totalorder %s39, %s40
      %p54 = scmp.eq.s32.totalorder %s32, 3
      %p55 = por %p53, %p54
      %p57 = scmp.ne.s32.totalorder %s40, %s56
      %p58 = scmp.eq.s32.totalorder %s32, 0
      %p59 = por %p57, %p58
      %s61 = sadd.s32 %s60, 1
      %p64 = scmp.eq.s32.totalorder %s26, 3
      %p65 = scmp.ne.s32.totalorder %s60, %s62
      %p66 = scmp.eq.s32.totalorder %s26, 0
      %p67 = por %p65, %p66
      %p68 = scmp.ne.s32.totalorder %s60, %s62
      %p69 = scmp.eq.s32.totalorder %s31, 3
      %p70 = por %p68, %p69
      %p71 = scmp.ne.s32.totalorder %s62, %s63
      %p72 = scmp.eq.s32.totalorder %s31, 0
      %p73 = por %p71, %p72
      %p74 = scmp.ne.s32.totalorder %s62, %s63
      %p75 = scmp.eq.s32.totalorder %s32, 3
      %p76 = por %p74, %p75
      %p78 = scmp.ne.s32.totalorder %s63, %s77
      %p79 = scmp.eq.s32.totalorder %s32, 0
      %p80 = por %p78, %p79
      %s82 = sadd.s32 %s81, 1
      %p85 = scmp.eq.s32.totalorder %s26, 3
      %p86 = scmp.ne.s32.totalorder %s81, %s83
      %p87 = scmp.eq.s32.totalorder %s26, 0
      %p88 = por %p86, %p87
      %p89 = scmp.ne.s32.totalorder %s81, %s83
      %p90 = scmp.eq.s32.totalorder %s31, 3
      %p91 = por %p89, %p90
      %p92 = scmp.ne.s32.totalorder %s83, %s84
      %p93 = scmp.eq.s32.totalorder %s31, 0
      %p94 = por %p92, %p93
      %p95 = scmp.ne.s32.totalorder %s83, %s84
      %p96 = scmp.eq.s32.totalorder %s32, 3
      %p97 = por %p95, %p96
      %p99 = scmp.ne.s32.totalorder %s84, %s98
      %p100 = scmp.eq.s32.totalorder %s32, 0
      %p101 = por %p99, %p100
      %s103 = sadd.s32 %s102, 1
      %p106 = scmp.eq.s32.totalorder %s26, 3
      %p107 = scmp.ne.s32.totalorder %s102, %s104
      %p108 = scmp.eq.s32.totalorder %s26, 0
      %p109 = por %p107, %p108
      %p110 = scmp.ne.s32.totalorder %s102, %s104
      %p111 = scmp.eq.s32.totalorder %s31, 3
      %p112 = por %p110, %p111
      %p113 = scmp.ne.s32.totalorder %s104, %s105
      %p114 = scmp.eq.s32.totalorder %s31, 0
      %p115 = por %p113, %p114
      %p116 = scmp.ne.s32.totalorder %s104, %s105
      %p117 = scmp.eq.s32.totalorder %s32, 3
      %p118 = por %p116, %p117
      %p120 = scmp.ne.s32.totalorder %s105, %s119
      %p121 = scmp.eq.s32.totalorder %s32, 0
      %p122 = por %p120, %p121
      %s124 = sadd.s32 %s123, 1
      %p127 = scmp.eq.s32.totalorder %s26, 3
      %p128 = scmp.ne.s32.totalorder %s123, %s125
      %p129 = scmp.eq.s32.totalorder %s26, 0
      %p130 = por %p128, %p129
      %p131 = scmp.ne.s32.totalorder %s123, %s125
      %p132 = scmp.eq.s32.totalorder %s31, 3
      %p133 = por %p131, %p132
      %p134 = scmp.ne.s32.totalorder %s125, %s126
      %p135 = scmp.eq.s32.totalorder %s31, 0
      %p136 = por %p134, %p135
      %p137 = scmp.ne.s32.totalorder %s125, %s126
      %p138 = scmp.eq.s32.totalorder %s32, 3
      %p139 = por %p137, %p138
      %p141 = scmp.ne.s32.totalorder %s126, %s140
      %p142 = scmp.eq.s32.totalorder %s32, 0
      %p143 = por %p141, %p142
      %s145 = sadd.s32 %s144, 1
      %p148 = scmp.eq.s32.totalorder %s26, 3
      %p149 = scmp.ne.s32.totalorder %s144, %s146
      %p150 = scmp.eq.s32.totalorder %s26, 0
      %p151 = por %p149, %p150
      %p152 = scmp.ne.s32.totalorder %s144, %s146
      %p153 = scmp.eq.s32.totalorder %s31, 3
      %p154 = por %p152, %p153
      %p155 = scmp.ne.s32.totalorder %s146, %s147
      %p156 = scmp.eq.s32.totalorder %s31, 0
      %p157 = por %p155, %p156
      %p158 = scmp.ne.s32.totalorder %s146, %s147
      %p159 = scmp.eq.s32.totalorder %s32, 3
      %p160 = por %p158, %p159
      %p162 = scmp.ne.s32.totalorder %s147, %s161
      %p163 = scmp.eq.s32.totalorder %s32, 0
      %p164 = por %p162, %p163
      %s166 = sadd.s32 %s165, 1
      %p169 = scmp.eq.s32.totalorder %s26, 3
      %p170 = scmp.ne.s32.totalorder %s165, %s167
      %p171 = scmp.eq.s32.totalorder %s26, 0
      %p172 = por %p170, %p171
      %p173 = scmp.ne.s32.totalorder %s165, %s167
      %p174 = scmp.eq.s32.totalorder %s31, 3
      %p175 = por %p173, %p174
      %p176 = scmp.ne.s32.totalorder %s167, %s168
      %p177 = scmp.eq.s32.totalorder %s31, 0
      %p178 = por %p176, %p177
      %p179 = scmp.ne.s32.totalorder %s167, %s168
      %p180 = scmp.eq.s32.totalorder %s32, 3
      %p181 = por %p179, %p180
      %p183 = scmp.ne.s32.totalorder %s168, %s182
      %p184 = scmp.eq.s32.totalorder %s32, 0
      %p185 = por %p183, %p184
      %s187 = sadd.s32 %s186, 1
      %p190 = scmp.eq.s32.totalorder %s26, 3
      %p191 = scmp.ne.s32.totalorder %s186, %s188
      %p192 = scmp.eq.s32.totalorder %s26, 0
      %p193 = por %p191, %p192
      %p194 = scmp.ne.s32.totalorder %s186, %s188
      %p195 = scmp.eq.s32.totalorder %s31, 3
      %p196 = por %p194, %p195
      %p197 = scmp.ne.s32.totalorder %s188, %s189
      %p198 = scmp.eq.s32.totalorder %s31, 0
      %p199 = por %p197, %p198
      %p200 = scmp.ne.s32.totalorder %s188, %s189
      %p201 = scmp.eq.s32.totalorder %s32, 3
      %p202 = por %p200, %p201
      %p204 = scmp.ne.s32.totalorder %s189, %s203
      %p205 = scmp.eq.s32.totalorder %s32, 0
      %p206 = por %p204, %p205
      %s208 = sadd.s32 %s207, 1
      %p211 = scmp.eq.s32.totalorder %s26, 3
      %p212 = scmp.ne.s32.totalorder %s207, %s209
      %p213 = scmp.eq.s32.totalorder %s26, 0
      %p214 = por %p212, %p213
      %p215 = scmp.ne.s32.totalorder %s207, %s209
      %p216 = scmp.eq.s32.totalorder %s31, 3
      %p217 = por %p215, %p216
      %p218 = scmp.ne.s32.totalorder %s209, %s210
      %p219 = scmp.eq.s32.totalorder %s31, 0
      %p220 = por %p218, %p219
      %p221 = scmp.ne.s32.totalorder %s209, %s210
      %p222 = scmp.eq.s32.totalorder %s32, 3
      %p223 = por %p221, %p222
      %p225 = scmp.ne.s32.totalorder %s210, %s224
      %p226 = scmp.eq.s32.totalorder %s32, 0
      %p227 = por %p225, %p226
      %p228 = scmp.le.s32.totalorder 1, %s26
      %p229 = scmp.lt.s32.totalorder %s26, 5
      %p230 = pnand %p228, %p229
      %p231 = pneg %p230
      // Predicated region
      $region9: #{tpu_custom_call.1} parent=5 // pred_check
        _
      $region10: #{tpu_custom_call.1} parent=5 // pred_check_branch
        %233 = sbr.rel (%p230) target = $region12
      $region11: #{tpu_custom_call.1} parent=5 // pred_region
        %s234 = ssub.s32 %s26, 1
        // Predicated region
        $region13: #{tpu_custom_call.1} parent=11 // pred_check
          %p235 = pneg %p73
        $region14: #{tpu_custom_call.1} parent=11 // pred_check_branch
          %237 = sbr.rel (%p235) target = $region16
        $region15: #{tpu_custom_call.1} parent=11 // pred_region
          _
        $region16: #{tpu_custom_call.1} parent=11 // pred_fallthru
          _
        // Predicated region
        $region17: #{tpu_custom_call.1} parent=11 // pred_check
          %p238 = pneg %p94
        $region18: #{tpu_custom_call.1} parent=11 // pred_check_branch
          %240 = sbr.rel (%p238) target = $region20
        $region19: #{tpu_custom_call.1} parent=11 // pred_region
          %s242 = ssub.s32 8192, 8192
          %243 = vsyncadd [#allocation11], %s242
          %s244 = sshll.u32 [#allocation10], 4
          %s245 = int_to_ptr.vmem [resolvable:$true] %s244
          %250 = dma.hbm_to_vmem [thread:$0]  %s4, 8192, %s245, [#allocation11], 128, 128, 8
        $region20: #{tpu_custom_call.1} parent=11 // pred_fallthru
          _
        // Predicated region
        $region21: #{tpu_custom_call.1} parent=11 // pred_check
          %p251 = pneg %p115
        $region22: #{tpu_custom_call.1} parent=11 // pred_check_branch
          %253 = sbr.rel (%p251) target = $region24
        $region23: #{tpu_custom_call.1} parent=11 // pred_region
          _
        $region24: #{tpu_custom_call.1} parent=11 // pred_fallthru
          _
        // Predicated region
        $region25: #{tpu_custom_call.1} parent=11 // pred_check
          %p254 = pneg %p136
        $region26: #{tpu_custom_call.1} parent=11 // pred_check_branch
          %256 = sbr.rel (%p254) target = $region28
        $region27: #{tpu_custom_call.1} parent=11 // pred_region
          %s258 = ssub.s32 2048, 2048
          %259 = vsyncadd [#allocation11], %s258
          %s260 = sshll.u32 [#allocation12], 4
          %s261 = int_to_ptr.vmem [resolvable:$true] %s260
          %266 = dma.hbm_to_vmem [thread:$0]  %s6, 2048, %s261, [#allocation11], 64, 64, 4
        $region28: #{tpu_custom_call.1} parent=11 // pred_fallthru
          _
        // Predicated region
        $region29: #{tpu_custom_call.1} parent=11 // pred_check
          %p267 = pneg %p157
        $region30: #{tpu_custom_call.1} parent=11 // pred_check_branch
          %269 = sbr.rel (%p267) target = $region32
        $region31: #{tpu_custom_call.1} parent=11 // pred_region
          _
        $region32: #{tpu_custom_call.1} parent=11 // pred_fallthru
          _
        // Predicated region
        $region33: #{tpu_custom_call.1} parent=11 // pred_check
          %p270 = pneg %p178
        $region34: #{tpu_custom_call.1} parent=11 // pred_check_branch
          %272 = sbr.rel (%p270) target = $region36
        $region35: #{tpu_custom_call.1} parent=11 // pred_region
          %s274 = ssub.s32 1024, 1024
          %275 = vsyncadd [#allocation14], %s274
          %s276 = sshll.u32 [#allocation13], 4
          %s277 = int_to_ptr.vmem [resolvable:$true] %s276
          %282 = dma.hbm_to_vmem [thread:$0]  %s8, 1024, %s277, [#allocation14], 64, 64, 4
        $region36: #{tpu_custom_call.1} parent=11 // pred_fallthru
          _
        // Predicated region
        $region37: #{tpu_custom_call.1} parent=11 // pred_check
          %p283 = pneg %p199
        $region38: #{tpu_custom_call.1} parent=11 // pred_check_branch
          %285 = sbr.rel (%p283) target = $region40
        $region39: #{tpu_custom_call.1} parent=11 // pred_region
          _
        $region40: #{tpu_custom_call.1} parent=11 // pred_fallthru
          _
      $region12: #{tpu_custom_call.1} parent=5 // pred_fallthru
        _
      %p286 = scmp.lt.s32.totalorder %s26, 4
      // Predicated region
      $region41: #{tpu_custom_call.1} parent=5 // pred_check
        %p287 = pneg %p286
      $region42: #{tpu_custom_call.1} parent=5 // pred_check_branch
        %289 = sbr.rel (%p287) target = $region44
      $region43: #{tpu_custom_call.1} parent=5 // pred_region
        // Predicated region
        $region45: #{tpu_custom_call.1} parent=43 // pred_check
          %p290 = pneg %p46
        $region46: #{tpu_custom_call.1} parent=43 // pred_check_branch
          %292 = sbr.rel (%p290) target = $region48
        $region47: #{tpu_custom_call.1} parent=43 // pred_region
          %s293 = sand.u32 %s36, 1
          %s294 = scalar_lea.sflag [#allocation8], %s293
          %s295 = sand.u32 %s36, 1
          %s296 = smul.addr %s295, 512
          %s297 = scalar_lea.vmem [#allocation7], %s296
          %s298 = smul.u32 32, %s26
          %s300 = ssub.s32 8192, 8192
          %301 = vsyncadd %s294, %s300
          %s302 = smul.addr %s298, 4
          %s303 = smul.addr %s302, 64
          %s304 = scalar_lea.hbm %s2, %s303
          %s305 = sshll.u32 %s297, 4
          %s306 = int_to_ptr.vmem [resolvable:$true] %s305
          %311 = dma.hbm_to_vmem [thread:$0]  %s304, 8192, %s306, %s294, 256, 256, 16
        $region48: #{tpu_custom_call.1} parent=43 // pred_fallthru
          _
      $region44: #{tpu_custom_call.1} parent=5 // pred_fallthru
        _
      %p312 = scmp.le.s32.totalorder 1, %s26
      %p313 = scmp.lt.s32.totalorder %s26, 5
      %p314 = pnand %p312, %p313
      %p315 = pneg %p314
      // Predicated region
      $region49: #{tpu_custom_call.1} parent=5 // pred_check
        _
      $region50: #{tpu_custom_call.1} parent=5 // pred_check_branch
        %317 = sbr.rel (%p314) target = $region52
      $region51: #{tpu_custom_call.1} parent=5 // pred_region
        %s318 = ssub.s32 %s26, 1
        %s319 = sand.u32 %s39, 1
        %s320 = scalar_lea.sflag [#allocation8], %s319
        %s321 = sand.u32 %s39, 1
        %s322 = smul.addr %s321, 512
        %s323 = scalar_lea.vmem [#allocation7], %s322
        // Predicated region
        $region53: #{tpu_custom_call.1} parent=51 // pred_check
          %p324 = pneg %p52
        $region54: #{tpu_custom_call.1} parent=51 // pred_check_branch
          %326 = sbr.rel (%p324) target = $region56
        $region55: #{tpu_custom_call.1} parent=51 // pred_region
          %327 = dma.done %s320, 8192
        $region56: #{tpu_custom_call.1} parent=51 // pred_fallthru
          _
        // Predicated region
        $region57: #{tpu_custom_call.1} parent=51 // pred_check
          %p328 = pneg %p94
        $region58: #{tpu_custom_call.1} parent=51 // pred_check_branch
          %330 = sbr.rel (%p328) target = $region60
        $region59: #{tpu_custom_call.1} parent=51 // pred_region
          %331 = dma.done [#allocation11], 8192
        $region60: #{tpu_custom_call.1} parent=51 // pred_fallthru
          _
        // Predicated region
        $region61: #{tpu_custom_call.1} parent=51 // pred_check
          %p332 = pneg %p136
        $region62: #{tpu_custom_call.1} parent=51 // pred_check_branch
          %334 = sbr.rel (%p332) target = $region64
        $region63: #{tpu_custom_call.1} parent=51 // pred_region
          %335 = dma.done [#allocation11], 2048
        $region64: #{tpu_custom_call.1} parent=51 // pred_fallthru
          _
        // Predicated region
        $region65: #{tpu_custom_call.1} parent=51 // pred_check
          %p336 = pneg %p178
        $region66: #{tpu_custom_call.1} parent=51 // pred_check_branch
          %338 = sbr.rel (%p336) target = $region68
        $region67: #{tpu_custom_call.1} parent=51 // pred_region
          %339 = dma.done [#allocation14], 1024
        $region68: #{tpu_custom_call.1} parent=51 // pred_fallthru
          _
        %s340 = sand.u32 %s39, 1
        %s341 = scalar_lea.sflag [#allocation8], %s340
        %s342 = sand.u32 %s39, 1
        %s343 = smul.addr %s342, 512
        %s344 = scalar_lea.vmem [#allocation7], %s343
        %p345 = pneg %p52
        %p346 = pneg %p49
        %p347 = pneg %p73
        %p348 = pneg %p70
        %p349 = pneg %p94
        %p350 = pneg %p91
        %p351 = pneg %p115
        %p352 = pneg %p112
        %p353 = pneg %p136
        %p354 = pneg %p133
        %p355 = pneg %p157
        %p356 = pneg %p154
        %p357 = pneg %p178
        %p358 = pneg %p175
        %p359 = pneg %p199
        %p360 = pneg %p196
        %p361 = pneg %p220
        %p362 = pneg %p217
        %s363 = smul.u32 32, %s31
        %p365 = scmp.lt.s32.totalorder %s31, 0
        %s366 = ssub.s32 0, %s31
        %s367 = scalar_select %p365, %s366, %s31
        %s368 = sand.u32 %s367, 1
        %s369 = ssub.s32 0, %s368
        %s370 = scalar_select %p365, %s369, %s368
        %p371 = scmp.ne.s32.totalorder %s370, 0
        %p372 = scmp.lt.s32.totalorder %s370, 0
        %p373 = pnand %p372, %p371
        %p374 = pneg %p373
        %s375 = sadd.s32 %s370, 2
        %s376 = scalar_select %p374, %s375, %s370
        %p377 = scmp.eq.s32.totalorder %s31, 0
        // Predicated region
        $region69: #{tpu_custom_call.1} parent=51 // pred_check
          %p378 = pneg %p377
        $region70: #{tpu_custom_call.1} parent=51 // pred_check_branch
          %380 = sbr.rel (%p378) target = $region72
        $region71: #{tpu_custom_call.1} parent=51 // pred_region
          %s381 = sld [smem:[#allocation6]]
          %s382 = smul.addr %s381, 16
          %s383 = scalar_lea.hbm %s1, %s382
          // Predicated region
          $region73: #{tpu_custom_call.1} parent=71 // pred_check
            _
          $region74: #{tpu_custom_call.1} parent=71 // pred_check_branch
            %385 = sbr.rel target = $region76
          $region75: #{tpu_custom_call.1} parent=71 // pred_region
            %386 = sst [smem:[#allocation18]] [#allocation17]
            %387 = sst [smem:[#allocation19]] [#allocation16]
          $region76: #{tpu_custom_call.1} parent=71 // pred_fallthru
            _
          %389 = shalt.err (0)
          %s391 = sshll.u32 [#allocation2], 4
          %s392 = int_to_ptr.vmem [resolvable:$true] %s391
          %394 = dma.hbm_to_vmem [thread:$0]  %s383, 16, %s392, [#allocation4]
          %s395 = sld [smem:[#allocation6 + $0x80]]
          %s396 = smul.addr %s395, 16
          %s397 = scalar_lea.hbm %s1, %s396
          %s398 = scalar_lea.vmem [#allocation2], 1
          %s399 = scalar_lea.sflag [#allocation4], 1
          // Predicated region
          $region77: #{tpu_custom_call.1} parent=71 // pred_check
            _
          $region78: #{tpu_custom_call.1} parent=71 // pred_check_branch
            %401 = sbr.rel target = $region80
          $region79: #{tpu_custom_call.1} parent=71 // pred_region
            %402 = sst [smem:[#allocation18]] [#allocation21]
            %403 = sst [smem:[#allocation19]] [#allocation20]
          $region80: #{tpu_custom_call.1} parent=71 // pred_fallthru
            _
          %405 = shalt.err (0)
          %s407 = sshll.u32 %s398, 4
          %s408 = int_to_ptr.vmem [resolvable:$true] %s407
          %410 = dma.hbm_to_vmem [thread:$0]  %s397, 16, %s408, %s399
          %s411 = sld [smem:[#allocation6 + $0x1]]
          %s412 = smul.addr %s411, 16
          %s413 = scalar_lea.hbm %s1, %s412
          %s414 = scalar_lea.vmem [#allocation2], 2
          %s415 = scalar_lea.sflag [#allocation4], 2
          // Predicated region
          $region81: #{tpu_custom_call.1} parent=71 // pred_check
            _
          $region82: #{tpu_custom_call.1} parent=71 // pred_check_branch
            %417 = sbr.rel target = $region84
          $region83: #{tpu_custom_call.1} parent=71 // pred_region
            %418 = sst [smem:[#allocation18]] [#allocation23]
            %419 = sst [smem:[#allocation19]] [#allocation22]
          $region84: #{tpu_custom_call.1} parent=71 // pred_fallthru
            _
          %421 = shalt.err (0)
          %s423 = sshll.u32 %s414, 4
          %s424 = int_to_ptr.vmem [resolvable:$true] %s423
          %426 = dma.hbm_to_vmem [thread:$0]  %s413, 16, %s424, %s415
          %s427 = sld [smem:[#allocation6 + $0x81]]
          %s428 = smul.addr %s427, 16
          %s429 = scalar_lea.hbm %s1, %s428
          %s430 = scalar_lea.vmem [#allocation2], 3
          %s431 = scalar_lea.sflag [#allocation4], 3
          // Predicated region
          $region85: #{tpu_custom_call.1} parent=71 // pred_check
            _
          $region86: #{tpu_custom_call.1} parent=71 // pred_check_branch
            %433 = sbr.rel target = $region88
          $region87: #{tpu_custom_call.1} parent=71 // pred_region
            %434 = sst [smem:[#allocation18]] [#allocation25]
            %435 = sst [smem:[#allocation19]] [#allocation24]
          $region88: #{tpu_custom_call.1} parent=71 // pred_fallthru
            _
          %437 = shalt.err (0)
          %s439 = sshll.u32 %s430, 4
          %s440 = int_to_ptr.vmem [resolvable:$true] %s439
          %442 = dma.hbm_to_vmem [thread:$0]  %s429, 16, %s440, %s431
          %v443 = vld [vmem:[%s3] sm:$0xf]
          %v445 = vlaneseq
          %v446 = vshrl.u32 %v445, 7
          %v447 = vsub.s32 0, %v446
          %v448 = vrot.slane %v443, %v447
          %v449 = vlaneseq
          %v450 = vshrl.u32 %v449, 7
          %v451 = vsub.s32 1, %v450
          %v452 = vrot.slane %v443, %v451
          %v453 = vlaneseq
          %v454 = vshrl.u32 %v453, 7
          %v455 = vsub.s32 2, %v454
          %v456 = vrot.slane %v443, %v455
          %v457 = vlaneseq
          %v458 = vshrl.u32 %v457, 7
          %v459 = vsub.s32 3, %v458
          %v460 = vrot.slane %v443, %v459
          %v461 = vcombine.low %v448, %v452
          %v462 = vcombine.low %v456, %v460
          %v464 = vunpack.c.l.s4 1983009808
          %v465 = vunpack.c.0.s8 %v464
          %v466 = vlaneseq
          %v467 = vshrl.u32 %v466, 7
          %v468 = vsub.s32 %v465, %v467
          %v469 = vrot.slane %v461, %v468
          %v471 = vunpack.c.l.s4 1983009808
          %v472 = vunpack.c.0.s8 %v471
          %v473 = vlaneseq
          %v474 = vshrl.u32 %v473, 7
          %v475 = vsub.s32 %v472, %v474
          %v476 = vrot.slane %v462, %v475
          %v477 = vcombine.low %v469, %v476
          %479 = vst [vmem:[#allocation3] sm:$0xff] %v477
        $region72: #{tpu_custom_call.1} parent=51 // pred_fallthru
          _
        %s480 = sadd.s32 %s31, 1
        %p481 = scmp.lt.s32.totalorder %s480, 4
        // Predicated region
        $region89: #{tpu_custom_call.1} parent=51 // pred_check
          %p482 = pneg %p481
        $region90: #{tpu_custom_call.1} parent=51 // pred_check_branch
          %484 = sbr.rel (%p482) target = $region92
        $region91: #{tpu_custom_call.1} parent=51 // pred_region
          %s485 = ssub.s32 1, %s376
          %s486 = smul.u32 %s480, 2
          %s487 = sld [smem:[#allocation6 + %s486]]
          %s488 = smul.addr %s487, 16
          %s489 = scalar_lea.hbm %s1, %s488
          %s490 = smul.u32 %s485, 4
          %s491 = scalar_lea.vmem [#allocation2], %s490
          %s492 = scalar_lea.sflag [#allocation4], %s490
          // Predicated region
          $region93: #{tpu_custom_call.1} parent=91 // pred_check
            _
          $region94: #{tpu_custom_call.1} parent=91 // pred_check_branch
            %494 = sbr.rel target = $region96
          $region95: #{tpu_custom_call.1} parent=91 // pred_region
            %495 = sst [smem:[#allocation18]] [#allocation27]
            %496 = sst [smem:[#allocation19]] [#allocation26]
          $region96: #{tpu_custom_call.1} parent=91 // pred_fallthru
            _
          %498 = shalt.err (0)
          %s500 = sshll.u32 %s491, 4
          %s501 = int_to_ptr.vmem [resolvable:$true] %s500
          %503 = dma.hbm_to_vmem [thread:$0]  %s489, 16, %s501, %s492
          %s504 = sshra.s32 %s486, 7
          %s505 = sand.u32 %s486, 127
          %s506 = sadd.s32 %s504, 1
          %s507 = smul.u32 %s506, 128
          %s508 = sshra.s32 %s486, 7
          %s509 = sand.u32 %s486, 127
          %s510 = sadd.s32 %s507, %s509
          %s511 = sld [smem:[#allocation6 + %s510]]
          %s512 = smul.addr %s511, 16
          %s513 = scalar_lea.hbm %s1, %s512
          %s514 = sadd.s32 1, %s490
          %s515 = scalar_lea.vmem [#allocation2], %s514
          %s516 = scalar_lea.sflag [#allocation4], %s514
          // Predicated region
          $region97: #{tpu_custom_call.1} parent=91 // pred_check
            _
          $region98: #{tpu_custom_call.1} parent=91 // pred_check_branch
            %518 = sbr.rel target = $region100
          $region99: #{tpu_custom_call.1} parent=91 // pred_region
            %519 = sst [smem:[#allocation18]] [#allocation29]
            %520 = sst [smem:[#allocation19]] [#allocation28]
          $region100: #{tpu_custom_call.1} parent=91 // pred_fallthru
            _
          %522 = shalt.err (0)
          %s524 = sshll.u32 %s515, 4
          %s525 = int_to_ptr.vmem [resolvable:$true] %s524
          %527 = dma.hbm_to_vmem [thread:$0]  %s513, 16, %s525, %s516
          %s528 = sadd.s32 %s486, 1
          %s529 = sld [smem:[#allocation6 + %s528]]
          %s530 = smul.addr %s529, 16
          %s531 = scalar_lea.hbm %s1, %s530
          %s532 = sadd.s32 2, %s490
          %s533 = scalar_lea.vmem [#allocation2], %s532
          %s534 = scalar_lea.sflag [#allocation4], %s532
          // Predicated region
          $region101: #{tpu_custom_call.1} parent=91 // pred_check
            _
          $region102: #{tpu_custom_call.1} parent=91 // pred_check_branch
            %536 = sbr.rel target = $region104
          $region103: #{tpu_custom_call.1} parent=91 // pred_region
            %537 = sst [smem:[#allocation18]] [#allocation31]
            %538 = sst [smem:[#allocation19]] [#allocation30]
          $region104: #{tpu_custom_call.1} parent=91 // pred_fallthru
            _
          %540 = shalt.err (0)
          %s542 = sshll.u32 %s533, 4
          %s543 = int_to_ptr.vmem [resolvable:$true] %s542
          %545 = dma.hbm_to_vmem [thread:$0]  %s531, 16, %s543, %s534
          %s546 = sshra.s32 %s528, 7
          %s547 = sand.u32 %s528, 127
          %s548 = sadd.s32 %s546, 1
          %s549 = smul.u32 %s548, 128
          %s550 = sshra.s32 %s528, 7
          %s551 = sand.u32 %s528, 127
          %s552 = sadd.s32 %s549, %s551
          %s553 = sld [smem:[#allocation6 + %s552]]
          %s554 = smul.addr %s553, 16
          %s555 = scalar_lea.hbm %s1, %s554
          %s556 = sadd.s32 3, %s490
          %s557 = scalar_lea.vmem [#allocation2], %s556
          %s558 = scalar_lea.sflag [#allocation4], %s556
          // Predicated region
          $region105: #{tpu_custom_call.1} parent=91 // pred_check
            _
          $region106: #{tpu_custom_call.1} parent=91 // pred_check_branch
            %560 = sbr.rel target = $region108
          $region107: #{tpu_custom_call.1} parent=91 // pred_region
            %561 = sst [smem:[#allocation18]] [#allocation33]
            %562 = sst [smem:[#allocation19]] [#allocation32]
          $region108: #{tpu_custom_call.1} parent=91 // pred_fallthru
            _
          %564 = shalt.err (0)
          %s566 = sshll.u32 %s557, 4
          %s567 = int_to_ptr.vmem [resolvable:$true] %s566
          %569 = dma.hbm_to_vmem [thread:$0]  %s555, 16, %s567, %s558
        $region92: #{tpu_custom_call.1} parent=51 // pred_fallthru
          _
        %s570 = smul.u32 %s376, 4
        %s571 = scalar_lea.sflag [#allocation4], %s570
        %573 = dma.done %s571, 16
        %s574 = sadd.s32 1, %s570
        %s575 = scalar_lea.sflag [#allocation4], %s574
        %577 = dma.done %s575, 16
        %s578 = sadd.s32 2, %s570
        %s579 = scalar_lea.sflag [#allocation4], %s578
        %581 = dma.done %s579, 16
        %s582 = sadd.s32 3, %s570
        %s583 = scalar_lea.sflag [#allocation4], %s582
        %585 = dma.done %s583, 16
        %s586 = smul.u32 %s376, 2
        %s587 = smul.addr %s586, 2
        %s588 = scalar_lea.vmem [#allocation2], %s587
        %v589 = vld [vmem:[%s588] sm:$0xf]
        %v592 = vunpack.c.l.s4 1983009808
        %v593 = vunpack.c.0.s8 %v592
        %v594 = vlaneseq
        %v595 = vshrl.u32 %v594, 7
        %v596 = vsub.s32 %v593, %v595
        %v597 = vrot.slane %v589, %v596
        %v598 = vcombine.high %v597, %v597
        %v601 = vpack.c.bf16 %v597, %v597
        %v602 = vpack.c.bf16 %v598, %v598
        %v603 = vld [vmem:[#allocation3] sm:$0xff]
        %v604 = vld [vmem:[%s323] sm:$0xff]
        %v605 = vld [vmem:[%s323 + $0x8] sm:$0xff]
        %v606 = vld [vmem:[%s323 + $0x10] sm:$0xff]
        %v607 = vld [vmem:[%s323 + $0x18] sm:$0xff]
        %v608 = vld [vmem:[%s323 + $0x20] sm:$0xff]
        %v609 = vld [vmem:[%s323 + $0x28] sm:$0xff]
        %v610 = vld [vmem:[%s323 + $0x30] sm:$0xff]
        %v611 = vld [vmem:[%s323 + $0x38] sm:$0xff]
        %v612 = vld [vmem:[%s323 + $0x40] sm:$0xff]
        %v613 = vld [vmem:[%s323 + $0x48] sm:$0xff]
        %v614 = vld [vmem:[%s323 + $0x50] sm:$0xff]
        %v615 = vld [vmem:[%s323 + $0x58] sm:$0xff]
        %v616 = vld [vmem:[%s323 + $0x60] sm:$0xff]
        %v617 = vld [vmem:[%s323 + $0x68] sm:$0xff]
        %v618 = vld [vmem:[%s323 + $0x70] sm:$0xff]
        %v619 = vld [vmem:[%s323 + $0x78] sm:$0xff]
        %v620 = vld [vmem:[%s323 + $0x80] sm:$0xff]
        %v621 = vld [vmem:[%s323 + $0x88] sm:$0xff]
        %v622 = vld [vmem:[%s323 + $0x90] sm:$0xff]
        %v623 = vld [vmem:[%s323 + $0x98] sm:$0xff]
        %v624 = vld [vmem:[%s323 + $0xa0] sm:$0xff]
        %v625 = vld [vmem:[%s323 + $0xa8] sm:$0xff]
        %v626 = vld [vmem:[%s323 + $0xb0] sm:$0xff]
        %v627 = vld [vmem:[%s323 + $0xb8] sm:$0xff]
        %v628 = vld [vmem:[%s323 + $0xc0] sm:$0xff]
        %v629 = vld [vmem:[%s323 + $0xc8] sm:$0xff]
        %v630 = vld [vmem:[%s323 + $0xd0] sm:$0xff]
        %v631 = vld [vmem:[%s323 + $0xd8] sm:$0xff]
        %v632 = vld [vmem:[%s323 + $0xe0] sm:$0xff]
        %v633 = vld [vmem:[%s323 + $0xe8] sm:$0xff]
        %v634 = vld [vmem:[%s323 + $0xf0] sm:$0xff]
        %v635 = vld [vmem:[%s323 + $0xf8] sm:$0xff]
        %v636 = vld [vmem:[%s323 + $0x100] sm:$0xff]
        %v637 = vld [vmem:[%s323 + $0x108] sm:$0xff]
        %v638 = vld [vmem:[%s323 + $0x110] sm:$0xff]
        %v639 = vld [vmem:[%s323 + $0x118] sm:$0xff]
        %v640 = vld [vmem:[%s323 + $0x120] sm:$0xff]
        %v641 = vld [vmem:[%s323 + $0x128] sm:$0xff]
        %v642 = vld [vmem:[%s323 + $0x130] sm:$0xff]
        %v643 = vld [vmem:[%s323 + $0x138] sm:$0xff]
        %v644 = vld [vmem:[%s323 + $0x140] sm:$0xff]
        %v645 = vld [vmem:[%s323 + $0x148] sm:$0xff]
        %v646 = vld [vmem:[%s323 + $0x150] sm:$0xff]
        %v647 = vld [vmem:[%s323 + $0x158] sm:$0xff]
        %v648 = vld [vmem:[%s323 + $0x160] sm:$0xff]
        %v649 = vld [vmem:[%s323 + $0x168] sm:$0xff]
        %v650 = vld [vmem:[%s323 + $0x170] sm:$0xff]
        %v651 = vld [vmem:[%s323 + $0x178] sm:$0xff]
        %v652 = vld [vmem:[%s323 + $0x180] sm:$0xff]
        %v653 = vld [vmem:[%s323 + $0x188] sm:$0xff]
        %v654 = vld [vmem:[%s323 + $0x190] sm:$0xff]
        %v655 = vld [vmem:[%s323 + $0x198] sm:$0xff]
        %v656 = vld [vmem:[%s323 + $0x1a0] sm:$0xff]
        %v657 = vld [vmem:[%s323 + $0x1a8] sm:$0xff]
        %v658 = vld [vmem:[%s323 + $0x1b0] sm:$0xff]
        %v659 = vld [vmem:[%s323 + $0x1b8] sm:$0xff]
        %v660 = vld [vmem:[%s323 + $0x1c0] sm:$0xff]
        %v661 = vld [vmem:[%s323 + $0x1c8] sm:$0xff]
        %v662 = vld [vmem:[%s323 + $0x1d0] sm:$0xff]
        %v663 = vld [vmem:[%s323 + $0x1d8] sm:$0xff]
        %v664 = vld [vmem:[%s323 + $0x1e0] sm:$0xff]
        %v665 = vld [vmem:[%s323 + $0x1e8] sm:$0xff]
        %v666 = vld [vmem:[%s323 + $0x1f0] sm:$0xff]
        %v667 = vld [vmem:[%s323 + $0x1f8] sm:$0xff]
        %v732 = vunpack.c.l.b16 %v604
        %v733 = vunpack.c.h.b16 %v604
        %v734 = vunpack.c.l.b16 %v605
        %v735 = vunpack.c.h.b16 %v605
        %v736 = vunpack.c.l.b16 %v606
        %v737 = vunpack.c.h.b16 %v606
        %v738 = vunpack.c.l.b16 %v607
        %v739 = vunpack.c.h.b16 %v607
        %v740 = vunpack.c.l.b16 %v608
        %v741 = vunpack.c.h.b16 %v608
        %v742 = vunpack.c.l.b16 %v609
        %v743 = vunpack.c.h.b16 %v609
        %v744 = vunpack.c.l.b16 %v610
        %v745 = vunpack.c.h.b16 %v610
        %v746 = vunpack.c.l.b16 %v611
        %v747 = vunpack.c.h.b16 %v611
        %v748 = vunpack.c.l.b16 %v612
        %v749 = vunpack.c.h.b16 %v612
        %v750 = vunpack.c.l.b16 %v613
        %v751 = vunpack.c.h.b16 %v613
        %v752 = vunpack.c.l.b16 %v614
        %v753 = vunpack.c.h.b16 %v614
        %v754 = vunpack.c.l.b16 %v615
        %v755 = vunpack.c.h.b16 %v615
        %v756 = vunpack.c.l.b16 %v616
        %v757 = vunpack.c.h.b16 %v616
        %v758 = vunpack.c.l.b16 %v617
        %v759 = vunpack.c.h.b16 %v617
        %v760 = vunpack.c.l.b16 %v618
        %v761 = vunpack.c.h.b16 %v618
        %v762 = vunpack.c.l.b16 %v619
        %v763 = vunpack.c.h.b16 %v619
        %v764 = vunpack.c.l.b16 %v620
        %v765 = vunpack.c.h.b16 %v620
        %v766 = vunpack.c.l.b16 %v621
        %v767 = vunpack.c.h.b16 %v621
        %v768 = vunpack.c.l.b16 %v622
        %v769 = vunpack.c.h.b16 %v622
        %v770 = vunpack.c.l.b16 %v623
        %v771 = vunpack.c.h.b16 %v623
        %v772 = vunpack.c.l.b16 %v624
        %v773 = vunpack.c.h.b16 %v624
        %v774 = vunpack.c.l.b16 %v625
        %v775 = vunpack.c.h.b16 %v625
        %v776 = vunpack.c.l.b16 %v626
        %v777 = vunpack.c.h.b16 %v626
        %v778 = vunpack.c.l.b16 %v627
        %v779 = vunpack.c.h.b16 %v627
        %v780 = vunpack.c.l.b16 %v628
        %v781 = vunpack.c.h.b16 %v628
        %v782 = vunpack.c.l.b16 %v629
        %v783 = vunpack.c.h.b16 %v629
        %v784 = vunpack.c.l.b16 %v630
        %v785 = vunpack.c.h.b16 %v630
        %v786 = vunpack.c.l.b16 %v631
        %v787 = vunpack.c.h.b16 %v631
        %v788 = vunpack.c.l.b16 %v632
        %v789 = vunpack.c.h.b16 %v632
        %v790 = vunpack.c.l.b16 %v633
        %v791 = vunpack.c.h.b16 %v633
        %v792 = vunpack.c.l.b16 %v634
        %v793 = vunpack.c.h.b16 %v634
        %v794 = vunpack.c.l.b16 %v635
        %v795 = vunpack.c.h.b16 %v635
        %v796 = vunpack.c.l.b16 %v636
        %v797 = vunpack.c.h.b16 %v636
        %v798 = vunpack.c.l.b16 %v637
        %v799 = vunpack.c.h.b16 %v637
        %v800 = vunpack.c.l.b16 %v638
        %v801 = vunpack.c.h.b16 %v638
        %v802 = vunpack.c.l.b16 %v639
        %v803 = vunpack.c.h.b16 %v639
        %v804 = vunpack.c.l.b16 %v640
        %v805 = vunpack.c.h.b16 %v640
        %v806 = vunpack.c.l.b16 %v641
        %v807 = vunpack.c.h.b16 %v641
        %v808 = vunpack.c.l.b16 %v642
        %v809 = vunpack.c.h.b16 %v642
        %v810 = vunpack.c.l.b16 %v643
        %v811 = vunpack.c.h.b16 %v643
        %v812 = vunpack.c.l.b16 %v644
        %v813 = vunpack.c.h.b16 %v644
        %v814 = vunpack.c.l.b16 %v645
        %v815 = vunpack.c.h.b16 %v645
        %v816 = vunpack.c.l.b16 %v646
        %v817 = vunpack.c.h.b16 %v646
        %v818 = vunpack.c.l.b16 %v647
        %v819 = vunpack.c.h.b16 %v647
        %v820 = vunpack.c.l.b16 %v648
        %v821 = vunpack.c.h.b16 %v648
        %v822 = vunpack.c.l.b16 %v649
        %v823 = vunpack.c.h.b16 %v649
        %v824 = vunpack.c.l.b16 %v650
        %v825 = vunpack.c.h.b16 %v650
        %v826 = vunpack.c.l.b16 %v651
        %v827 = vunpack.c.h.b16 %v651
        %v828 = vunpack.c.l.b16 %v652
        %v829 = vunpack.c.h.b16 %v652
        %v830 = vunpack.c.l.b16 %v653
        %v831 = vunpack.c.h.b16 %v653
        %v832 = vunpack.c.l.b16 %v654
        %v833 = vunpack.c.h.b16 %v654
        %v834 = vunpack.c.l.b16 %v655
        %v835 = vunpack.c.h.b16 %v655
        %v836 = vunpack.c.l.b16 %v656
        %v837 = vunpack.c.h.b16 %v656
        %v838 = vunpack.c.l.b16 %v657
        %v839 = vunpack.c.h.b16 %v657
        %v840 = vunpack.c.l.b16 %v658
        %v841 = vunpack.c.h.b16 %v658
        %v842 = vunpack.c.l.b16 %v659
        %v843 = vunpack.c.h.b16 %v659
        %v844 = vunpack.c.l.b16 %v660
        %v845 = vunpack.c.h.b16 %v660
        %v846 = vunpack.c.l.b16 %v661
        %v847 = vunpack.c.h.b16 %v661
        %v848 = vunpack.c.l.b16 %v662
        %v849 = vunpack.c.h.b16 %v662
        %v850 = vunpack.c.l.b16 %v663
        %v851 = vunpack.c.h.b16 %v663
        %v852 = vunpack.c.l.b16 %v664
        %v853 = vunpack.c.h.b16 %v664
        %v854 = vunpack.c.l.b16 %v665
        %v855 = vunpack.c.h.b16 %v665
        %v856 = vunpack.c.l.b16 %v666
        %v857 = vunpack.c.h.b16 %v666
        %v858 = vunpack.c.l.b16 %v667
        %v859 = vunpack.c.h.b16 %v667
        %v860 = vpack.c.b16 %v736, %v732
        %v861 = vpack.c.b16 %v737, %v733
        %v862 = vpack.c.b16 %v738, %v734
        %v863 = vpack.c.b16 %v739, %v735
        %v864 = vpack.c.b16 %v744, %v740
        %v865 = vpack.c.b16 %v745, %v741
        %v866 = vpack.c.b16 %v746, %v742
        %v867 = vpack.c.b16 %v747, %v743
        %v868 = vpack.c.b16 %v752, %v748
        %v869 = vpack.c.b16 %v753, %v749
        %v870 = vpack.c.b16 %v754, %v750
        %v871 = vpack.c.b16 %v755, %v751
        %v872 = vpack.c.b16 %v760, %v756
        %v873 = vpack.c.b16 %v761, %v757
        %v874 = vpack.c.b16 %v762, %v758
        %v875 = vpack.c.b16 %v763, %v759
        %v876 = vpack.c.b16 %v768, %v764
        %v877 = vpack.c.b16 %v769, %v765
        %v878 = vpack.c.b16 %v770, %v766
        %v879 = vpack.c.b16 %v771, %v767
        %v880 = vpack.c.b16 %v776, %v772
        %v881 = vpack.c.b16 %v777, %v773
        %v882 = vpack.c.b16 %v778, %v774
        %v883 = vpack.c.b16 %v779, %v775
        %v884 = vpack.c.b16 %v784, %v780
        %v885 = vpack.c.b16 %v785, %v781
        %v886 = vpack.c.b16 %v786, %v782
        %v887 = vpack.c.b16 %v787, %v783
        %v888 = vpack.c.b16 %v792, %v788
        %v889 = vpack.c.b16 %v793, %v789
        %v890 = vpack.c.b16 %v794, %v790
        %v891 = vpack.c.b16 %v795, %v791
        %v892 = vpack.c.b16 %v800, %v796
        %v893 = vpack.c.b16 %v801, %v797
        %v894 = vpack.c.b16 %v802, %v798
        %v895 = vpack.c.b16 %v803, %v799
        %v896 = vpack.c.b16 %v808, %v804
        %v897 = vpack.c.b16 %v809, %v805
        %v898 = vpack.c.b16 %v810, %v806
        %v899 = vpack.c.b16 %v811, %v807
        %v900 = vpack.c.b16 %v816, %v812
        %v901 = vpack.c.b16 %v817, %v813
        %v902 = vpack.c.b16 %v818, %v814
        %v903 = vpack.c.b16 %v819, %v815
        %v904 = vpack.c.b16 %v824, %v820
        %v905 = vpack.c.b16 %v825, %v821
        %v906 = vpack.c.b16 %v826, %v822
        %v907 = vpack.c.b16 %v827, %v823
        %v908 = vpack.c.b16 %v832, %v828
        %v909 = vpack.c.b16 %v833, %v829
        %v910 = vpack.c.b16 %v834, %v830
        %v911 = vpack.c.b16 %v835, %v831
        %v912 = vpack.c.b16 %v840, %v836
        %v913 = vpack.c.b16 %v841, %v837
        %v914 = vpack.c.b16 %v842, %v838
        %v915 = vpack.c.b16 %v843, %v839
        %v916 = vpack.c.b16 %v848, %v844
        %v917 = vpack.c.b16 %v849, %v845
        %v918 = vpack.c.b16 %v850, %v846
        %v919 = vpack.c.b16 %v851, %v847
        %v920 = vpack.c.b16 %v856, %v852
        %v921 = vpack.c.b16 %v857, %v853
        %v922 = vpack.c.b16 %v858, %v854
        %v923 = vpack.c.b16 %v859, %v855
        %988 = vmatprep.subr.bf16.mxu0 %v889
        %989 = vmatpush1.bf16.msra.mxu0 %v888
        %990 = vmatprep.subr.bf16.mxu0 %v885
        %991 = vmatpush1.bf16.msra.mxu0 %v884
        %992 = vmatprep.subr.bf16.mxu0 %v881
        %993 = vmatpush1.bf16.msra.mxu0 %v880
        %994 = vmatprep.subr.bf16.mxu0 %v877
        %995 = vmatpush1.bf16.msra.mxu0 %v876
        %996 = vmatprep.subr.bf16.mxu0 %v873
        %997 = vmatpush1.bf16.msra.mxu0 %v872
        %998 = vmatprep.subr.bf16.mxu0 %v869
        %999 = vmatpush1.bf16.msra.mxu0 %v868
        %1000 = vmatprep.subr.bf16.mxu0 %v865
        %1001 = vmatpush1.bf16.msra.mxu0 %v864
        %1002 = vmatprep.subr.bf16.mxu0 %v861
        %1003 = vmatpush1.bf16.msra.mxu0 %v860
        %1004 = vmatprep.subr.bf16.mxu0 %v921
        %1005 = vmatpush2.bf16.msra.mxu0 %v920
        %1006 = vmatprep.subr.bf16.mxu0 %v917
        %1007 = vmatpush2.bf16.msra.mxu0 %v916
        %1008 = vmatprep.subr.bf16.mxu0 %v913
        %1009 = vmatpush2.bf16.msra.mxu0 %v912
        %1010 = vmatprep.subr.bf16.mxu0 %v909
        %1011 = vmatpush2.bf16.msra.mxu0 %v908
        %1012 = vmatprep.subr.bf16.mxu0 %v905
        %1013 = vmatpush2.bf16.msra.mxu0 %v904
        %1014 = vmatprep.subr.bf16.mxu0 %v901
        %1015 = vmatpush2.bf16.msra.mxu0 %v900
        %1016 = vmatprep.subr.bf16.mxu0 %v897
        %1017 = vmatpush2.bf16.msra.mxu0 %v896
        %1018 = vmatprep.subr.bf16.mxu0 %v893
        %1019 = vmatpush2.bf16.msra.mxu0 %v892
        %1020 = vmatprep.mubr.bf16.mxu0 %v602
        %1021 = vmatmul.mubr.bf16.gmra.mxu0 %v601
        %v1022 = vpop.f32.mrf.mxu0
        %v1023 = vadd.f32 0.0, %v1022
        %v1024 = vpop.f32.mrf.mxu0
        %v1025 = vadd.f32 0.0, %v1024
        %v1026 = vpop.f32.mrf.mxu0
        %v1027 = vpop.f32.mrf.mxu0
        %1028 = vdwg.mxu0
        %1029 = vmatprep.subr.bf16.mxu0 %v891
        %1030 = vmatpush1.bf16.msra.mxu0 %v890
        %1031 = vmatprep.subr.bf16.mxu0 %v887
        %1032 = vmatpush1.bf16.msra.mxu0 %v886
        %1033 = vmatprep.subr.bf16.mxu0 %v883
        %1034 = vmatpush1.bf16.msra.mxu0 %v882
        %1035 = vmatprep.subr.bf16.mxu0 %v879
        %1036 = vmatpush1.bf16.msra.mxu0 %v878
        %1037 = vmatprep.subr.bf16.mxu0 %v875
        %1038 = vmatpush1.bf16.msra.mxu0 %v874
        %1039 = vmatprep.subr.bf16.mxu0 %v871
        %1040 = vmatpush1.bf16.msra.mxu0 %v870
        %1041 = vmatprep.subr.bf16.mxu0 %v867
        %1042 = vmatpush1.bf16.msra.mxu0 %v866
        %1043 = vmatprep.subr.bf16.mxu0 %v863
        %1044 = vmatpush1.bf16.msra.mxu0 %v862
        %1045 = vmatprep.subr.bf16.mxu0 %v923
        %1046 = vmatpush2.bf16.msra.mxu0 %v922
        %1047 = vmatprep.subr.bf16.mxu0 %v919
        %1048 = vmatpush2.bf16.msra.mxu0 %v918
        %1049 = vmatprep.subr.bf16.mxu0 %v915
        %1050 = vmatpush2.bf16.msra.mxu0 %v914
        %1051 = vmatprep.subr.bf16.mxu0 %v911
        %1052 = vmatpush2.bf16.msra.mxu0 %v910
        %1053 = vmatprep.subr.bf16.mxu0 %v907
        %1054 = vmatpush2.bf16.msra.mxu0 %v906
        %1055 = vmatprep.subr.bf16.mxu0 %v903
        %1056 = vmatpush2.bf16.msra.mxu0 %v902
        %1057 = vmatprep.subr.bf16.mxu0 %v899
        %1058 = vmatpush2.bf16.msra.mxu0 %v898
        %1059 = vmatprep.subr.bf16.mxu0 %v895
        %1060 = vmatpush2.bf16.msra.mxu0 %v894
        %1061 = vmatprep.mubr.bf16.mxu0 %v602
        %1062 = vmatmul.mubr.bf16.gmra.mxu0 %v601
        %v1063 = vpop.f32.mrf.mxu0
        %v1064 = vadd.f32 0.0, %v1063
        %v1065 = vpop.f32.mrf.mxu0
        %v1066 = vadd.f32 0.0, %v1065
        %v1067 = vpop.f32.mrf.mxu0
        %v1068 = vpop.f32.mrf.mxu0
        %1069 = vdwg.mxu0
        %v1074 = vcombine.low %v1023, %v1025
        %v1075 = vcombine.low %v1064, %v1066
        %v1077 = vunpack.c.l.s4 1983009808
        %v1078 = vunpack.c.0.s8 %v1077
        %v1079 = vlaneseq
        %v1080 = vshrl.u32 %v1079, 7
        %v1081 = vsub.s32 %v1078, %v1080
        %v1082 = vrot.slane %v1074, %v1081
        %v1084 = vunpack.c.l.s4 1983009808
        %v1085 = vunpack.c.0.s8 %v1084
        %v1086 = vlaneseq
        %v1087 = vshrl.u32 %v1086, 7
        %v1088 = vsub.s32 %v1085, %v1087
        %v1089 = vrot.slane %v1075, %v1088
        %v1090 = vcombine.low %v1082, %v1089
        %v1092 = vadd.f32 %v603, %v1090
        %1093 = vst [vmem:[#allocation3] sm:$0xff] %v1092
        %p1094 = scmp.eq.s32.totalorder %s31, 3
        // Predicated region
        $region109: #{tpu_custom_call.1} parent=51 // pred_check
          %p1095 = pneg %p1094
        $region110: #{tpu_custom_call.1} parent=51 // pred_check_branch
          %1097 = sbr.rel (%p1095) target = $region112
        $region111: #{tpu_custom_call.1} parent=51 // pred_region
          %v1098 = vld [vmem:[#allocation3] sm:$0xff]
          %v1099 = vmax.f32 %v1098, 0.0
          %v1101 = vcombine.high %v1099, %v1099
          %v1103 = vunpack.c.l.s4 1983009808
          %v1104 = vunpack.c.0.s8 %v1103
          %v1105 = vlaneseq
          %v1106 = vshrl.u32 %v1105, 7
          %v1107 = vsub.s32 %v1104, %v1106
          %v1108 = vrot.slane %v1099, %v1107
          %v1110 = vunpack.c.l.s4 1983009808
          %v1111 = vunpack.c.0.s8 %v1110
          %v1112 = vlaneseq
          %v1113 = vshrl.u32 %v1112, 7
          %v1114 = vsub.s32 %v1111, %v1113
          %v1115 = vrot.slane %v1101, %v1114
          %v1116 = vcombine.high %v1108, %v1108
          %v1117 = vcombine.high %v1115, %v1115
          %v1122 = vpack.c.bf16 %v1108, %v1108
          %v1123 = vpack.c.bf16 %v1116, %v1116
          %v1124 = vpack.c.bf16 %v1115, %v1115
          %v1125 = vpack.c.bf16 %v1117, %v1117
          %v1126 = vld [vmem:[#allocation10] sm:$0xff]
          %v1127 = vld [vmem:[#allocation10 + $0x8] sm:$0xff]
          %v1128 = vld [vmem:[#allocation10 + $0x10] sm:$0xff]
          %v1129 = vld [vmem:[#allocation10 + $0x18] sm:$0xff]
          %v1130 = vld [vmem:[#allocation10 + $0x20] sm:$0xff]
          %v1131 = vld [vmem:[#allocation10 + $0x28] sm:$0xff]
          %v1132 = vld [vmem:[#allocation10 + $0x30] sm:$0xff]
          %v1133 = vld [vmem:[#allocation10 + $0x38] sm:$0xff]
          %v1134 = vld [vmem:[#allocation10 + $0x40] sm:$0xff]
          %v1135 = vld [vmem:[#allocation10 + $0x48] sm:$0xff]
          %v1136 = vld [vmem:[#allocation10 + $0x50] sm:$0xff]
          %v1137 = vld [vmem:[#allocation10 + $0x58] sm:$0xff]
          %v1138 = vld [vmem:[#allocation10 + $0x60] sm:$0xff]
          %v1139 = vld [vmem:[#allocation10 + $0x68] sm:$0xff]
          %v1140 = vld [vmem:[#allocation10 + $0x70] sm:$0xff]
          %v1141 = vld [vmem:[#allocation10 + $0x78] sm:$0xff]
          %v1142 = vld [vmem:[#allocation10 + $0x80] sm:$0xff]
          %v1143 = vld [vmem:[#allocation10 + $0x88] sm:$0xff]
          %v1144 = vld [vmem:[#allocation10 + $0x90] sm:$0xff]
          %v1145 = vld [vmem:[#allocation10 + $0x98] sm:$0xff]
          %v1146 = vld [vmem:[#allocation10 + $0xa0] sm:$0xff]
          %v1147 = vld [vmem:[#allocation10 + $0xa8] sm:$0xff]
          %v1148 = vld [vmem:[#allocation10 + $0xb0] sm:$0xff]
          %v1149 = vld [vmem:[#allocation10 + $0xb8] sm:$0xff]
          %v1150 = vld [vmem:[#allocation10 + $0xc0] sm:$0xff]
          %v1151 = vld [vmem:[#allocation10 + $0xc8] sm:$0xff]
          %v1152 = vld [vmem:[#allocation10 + $0xd0] sm:$0xff]
          %v1153 = vld [vmem:[#allocation10 + $0xd8] sm:$0xff]
          %v1154 = vld [vmem:[#allocation10 + $0xe0] sm:$0xff]
          %v1155 = vld [vmem:[#allocation10 + $0xe8] sm:$0xff]
          %v1156 = vld [vmem:[#allocation10 + $0xf0] sm:$0xff]
          %v1157 = vld [vmem:[#allocation10 + $0xf8] sm:$0xff]
          %v1158 = vld [vmem:[#allocation10 + $0x100] sm:$0xff]
          %v1159 = vld [vmem:[#allocation10 + $0x108] sm:$0xff]
          %v1160 = vld [vmem:[#allocation10 + $0x110] sm:$0xff]
          %v1161 = vld [vmem:[#allocation10 + $0x118] sm:$0xff]
          %v1162 = vld [vmem:[#allocation10 + $0x120] sm:$0xff]
          %v1163 = vld [vmem:[#allocation10 + $0x128] sm:$0xff]
          %v1164 = vld [vmem:[#allocation10 + $0x130] sm:$0xff]
          %v1165 = vld [vmem:[#allocation10 + $0x138] sm:$0xff]
          %v1166 = vld [vmem:[#allocation10 + $0x140] sm:$0xff]
          %v1167 = vld [vmem:[#allocation10 + $0x148] sm:$0xff]
          %v1168 = vld [vmem:[#allocation10 + $0x150] sm:$0xff]
          %v1169 = vld [vmem:[#allocation10 + $0x158] sm:$0xff]
          %v1170 = vld [vmem:[#allocation10 + $0x160] sm:$0xff]
          %v1171 = vld [vmem:[#allocation10 + $0x168] sm:$0xff]
          %v1172 = vld [vmem:[#allocation10 + $0x170] sm:$0xff]
          %v1173 = vld [vmem:[#allocation10 + $0x178] sm:$0xff]
          %v1174 = vld [vmem:[#allocation10 + $0x180] sm:$0xff]
          %v1175 = vld [vmem:[#allocation10 + $0x188] sm:$0xff]
          %v1176 = vld [vmem:[#allocation10 + $0x190] sm:$0xff]
          %v1177 = vld [vmem:[#allocation10 + $0x198] sm:$0xff]
          %v1178 = vld [vmem:[#allocation10 + $0x1a0] sm:$0xff]
          %v1179 = vld [vmem:[#allocation10 + $0x1a8] sm:$0xff]
          %v1180 = vld [vmem:[#allocation10 + $0x1b0] sm:$0xff]
          %v1181 = vld [vmem:[#allocation10 + $0x1b8] sm:$0xff]
          %v1182 = vld [vmem:[#allocation10 + $0x1c0] sm:$0xff]
          %v1183 = vld [vmem:[#allocation10 + $0x1c8] sm:$0xff]
          %v1184 = vld [vmem:[#allocation10 + $0x1d0] sm:$0xff]
          %v1185 = vld [vmem:[#allocation10 + $0x1d8] sm:$0xff]
          %v1186 = vld [vmem:[#allocation10 + $0x1e0] sm:$0xff]
          %v1187 = vld [vmem:[#allocation10 + $0x1e8] sm:$0xff]
          %v1188 = vld [vmem:[#allocation10 + $0x1f0] sm:$0xff]
          %v1189 = vld [vmem:[#allocation10 + $0x1f8] sm:$0xff]
          %v1190 = vld [vmem:[%s5] sm:$0x3]
          %v1192 = vlaneseq
          %v1193 = vshrl.u32 %v1192, 7
          %v1194 = vsub.s32 0, %v1193
          %v1195 = vrot.slane %v1190, %v1194
          %v1196 = vlaneseq
          %v1197 = vshrl.u32 %v1196, 7
          %v1198 = vsub.s32 1, %v1197
          %v1199 = vrot.slane %v1190, %v1198
          %v1266 = vunpack.c.l.b16 %v1126
          %v1267 = vunpack.c.h.b16 %v1126
          %v1268 = vunpack.c.l.b16 %v1127
          %v1269 = vunpack.c.h.b16 %v1127
          %v1270 = vunpack.c.l.b16 %v1128
          %v1271 = vunpack.c.h.b16 %v1128
          %v1272 = vunpack.c.l.b16 %v1129
          %v1273 = vunpack.c.h.b16 %v1129
          %v1274 = vunpack.c.l.b16 %v1130
          %v1275 = vunpack.c.h.b16 %v1130
          %v1276 = vunpack.c.l.b16 %v1131
          %v1277 = vunpack.c.h.b16 %v1131
          %v1278 = vunpack.c.l.b16 %v1132
          %v1279 = vunpack.c.h.b16 %v1132
          %v1280 = vunpack.c.l.b16 %v1133
          %v1281 = vunpack.c.h.b16 %v1133
          %v1282 = vunpack.c.l.b16 %v1134
          %v1283 = vunpack.c.h.b16 %v1134
          %v1284 = vunpack.c.l.b16 %v1135
          %v1285 = vunpack.c.h.b16 %v1135
          %v1286 = vunpack.c.l.b16 %v1136
          %v1287 = vunpack.c.h.b16 %v1136
          %v1288 = vunpack.c.l.b16 %v1137
          %v1289 = vunpack.c.h.b16 %v1137
          %v1290 = vunpack.c.l.b16 %v1138
          %v1291 = vunpack.c.h.b16 %v1138
          %v1292 = vunpack.c.l.b16 %v1139
          %v1293 = vunpack.c.h.b16 %v1139
          %v1294 = vunpack.c.l.b16 %v1140
          %v1295 = vunpack.c.h.b16 %v1140
          %v1296 = vunpack.c.l.b16 %v1141
          %v1297 = vunpack.c.h.b16 %v1141
          %v1298 = vunpack.c.l.b16 %v1142
          %v1299 = vunpack.c.h.b16 %v1142
          %v1300 = vunpack.c.l.b16 %v1143
          %v1301 = vunpack.c.h.b16 %v1143
          %v1302 = vunpack.c.l.b16 %v1144
          %v1303 = vunpack.c.h.b16 %v1144
          %v1304 = vunpack.c.l.b16 %v1145
          %v1305 = vunpack.c.h.b16 %v1145
          %v1306 = vunpack.c.l.b16 %v1146
          %v1307 = vunpack.c.h.b16 %v1146
          %v1308 = vunpack.c.l.b16 %v1147
          %v1309 = vunpack.c.h.b16 %v1147
          %v1310 = vunpack.c.l.b16 %v1148
          %v1311 = vunpack.c.h.b16 %v1148
          %v1312 = vunpack.c.l.b16 %v1149
          %v1313 = vunpack.c.h.b16 %v1149
          %v1314 = vunpack.c.l.b16 %v1150
          %v1315 = vunpack.c.h.b16 %v1150
          %v1316 = vunpack.c.l.b16 %v1151
          %v1317 = vunpack.c.h.b16 %v1151
          %v1318 = vunpack.c.l.b16 %v1152
          %v1319 = vunpack.c.h.b16 %v1152
          %v1320 = vunpack.c.l.b16 %v1153
          %v1321 = vunpack.c.h.b16 %v1153
          %v1322 = vunpack.c.l.b16 %v1154
          %v1323 = vunpack.c.h.b16 %v1154
          %v1324 = vunpack.c.l.b16 %v1155
          %v1325 = vunpack.c.h.b16 %v1155
          %v1326 = vunpack.c.l.b16 %v1156
          %v1327 = vunpack.c.h.b16 %v1156
          %v1328 = vunpack.c.l.b16 %v1157
          %v1329 = vunpack.c.h.b16 %v1157
          %v1330 = vunpack.c.l.b16 %v1158
          %v1331 = vunpack.c.h.b16 %v1158
          %v1332 = vunpack.c.l.b16 %v1159
          %v1333 = vunpack.c.h.b16 %v1159
          %v1334 = vunpack.c.l.b16 %v1160
          %v1335 = vunpack.c.h.b16 %v1160
          %v1336 = vunpack.c.l.b16 %v1161
          %v1337 = vunpack.c.h.b16 %v1161
          %v1338 = vunpack.c.l.b16 %v1162
          %v1339 = vunpack.c.h.b16 %v1162
          %v1340 = vunpack.c.l.b16 %v1163
          %v1341 = vunpack.c.h.b16 %v1163
          %v1342 = vunpack.c.l.b16 %v1164
          %v1343 = vunpack.c.h.b16 %v1164
          %v1344 = vunpack.c.l.b16 %v1165
          %v1345 = vunpack.c.h.b16 %v1165
          %v1346 = vunpack.c.l.b16 %v1166
          %v1347 = vunpack.c.h.b16 %v1166
          %v1348 = vunpack.c.l.b16 %v1167
          %v1349 = vunpack.c.h.b16 %v1167
          %v1350 = vunpack.c.l.b16 %v1168
          %v1351 = vunpack.c.h.b16 %v1168
          %v1352 = vunpack.c.l.b16 %v1169
          %v1353 = vunpack.c.h.b16 %v1169
          %v1354 = vunpack.c.l.b16 %v1170
          %v1355 = vunpack.c.h.b16 %v1170
          %v1356 = vunpack.c.l.b16 %v1171
          %v1357 = vunpack.c.h.b16 %v1171
          %v1358 = vunpack.c.l.b16 %v1172
          %v1359 = vunpack.c.h.b16 %v1172
          %v1360 = vunpack.c.l.b16 %v1173
          %v1361 = vunpack.c.h.b16 %v1173
          %v1362 = vunpack.c.l.b16 %v1174
          %v1363 = vunpack.c.h.b16 %v1174
          %v1364 = vunpack.c.l.b16 %v1175
          %v1365 = vunpack.c.h.b16 %v1175
          %v1366 = vunpack.c.l.b16 %v1176
          %v1367 = vunpack.c.h.b16 %v1176
          %v1368 = vunpack.c.l.b16 %v1177
          %v1369 = vunpack.c.h.b16 %v1177
          %v1370 = vunpack.c.l.b16 %v1178
          %v1371 = vunpack.c.h.b16 %v1178
          %v1372 = vunpack.c.l.b16 %v1179
          %v1373 = vunpack.c.h.b16 %v1179
          %v1374 = vunpack.c.l.b16 %v1180
          %v1375 = vunpack.c.h.b16 %v1180
          %v1376 = vunpack.c.l.b16 %v1181
          %v1377 = vunpack.c.h.b16 %v1181
          %v1378 = vunpack.c.l.b16 %v1182
          %v1379 = vunpack.c.h.b16 %v1182
          %v1380 = vunpack.c.l.b16 %v1183
          %v1381 = vunpack.c.h.b16 %v1183
          %v1382 = vunpack.c.l.b16 %v1184
          %v1383 = vunpack.c.h.b16 %v1184
          %v1384 = vunpack.c.l.b16 %v1185
          %v1385 = vunpack.c.h.b16 %v1185
          %v1386 = vunpack.c.l.b16 %v1186
          %v1387 = vunpack.c.h.b16 %v1186
          %v1388 = vunpack.c.l.b16 %v1187
          %v1389 = vunpack.c.h.b16 %v1187
          %v1390 = vunpack.c.l.b16 %v1188
          %v1391 = vunpack.c.h.b16 %v1188
          %v1392 = vunpack.c.l.b16 %v1189
          %v1393 = vunpack.c.h.b16 %v1189
          %v1394 = vpack.c.b16 %v1268, %v1266
          %v1395 = vpack.c.b16 %v1269, %v1267
          %v1396 = vpack.c.b16 %v1272, %v1270
          %v1397 = vpack.c.b16 %v1273, %v1271
          %v1398 = vpack.c.b16 %v1276, %v1274
          %v1399 = vpack.c.b16 %v1277, %v1275
          %v1400 = vpack.c.b16 %v1280, %v1278
          %v1401 = vpack.c.b16 %v1281, %v1279
          %v1402 = vpack.c.b16 %v1284, %v1282
          %v1403 = vpack.c.b16 %v1285, %v1283
          %v1404 = vpack.c.b16 %v1288, %v1286
          %v1405 = vpack.c.b16 %v1289, %v1287
          %v1406 = vpack.c.b16 %v1292, %v1290
          %v1407 = vpack.c.b16 %v1293, %v1291
          %v1408 = vpack.c.b16 %v1296, %v1294
          %v1409 = vpack.c.b16 %v1297, %v1295
          %v1410 = vpack.c.b16 %v1300, %v1298
          %v1411 = vpack.c.b16 %v1301, %v1299
          %v1412 = vpack.c.b16 %v1304, %v1302
          %v1413 = vpack.c.b16 %v1305, %v1303
          %v1414 = vpack.c.b16 %v1308, %v1306
          %v1415 = vpack.c.b16 %v1309, %v1307
          %v1416 = vpack.c.b16 %v1312, %v1310
          %v1417 = vpack.c.b16 %v1313, %v1311
          %v1418 = vpack.c.b16 %v1316, %v1314
          %v1419 = vpack.c.b16 %v1317, %v1315
          %v1420 = vpack.c.b16 %v1320, %v1318
          %v1421 = vpack.c.b16 %v1321, %v1319
          %v1422 = vpack.c.b16 %v1324, %v1322
          %v1423 = vpack.c.b16 %v1325, %v1323
          %v1424 = vpack.c.b16 %v1328, %v1326
          %v1425 = vpack.c.b16 %v1329, %v1327
          %v1426 = vpack.c.b16 %v1332, %v1330
          %v1427 = vpack.c.b16 %v1333, %v1331
          %v1428 = vpack.c.b16 %v1336, %v1334
          %v1429 = vpack.c.b16 %v1337, %v1335
          %v1430 = vpack.c.b16 %v1340, %v1338
          %v1431 = vpack.c.b16 %v1341, %v1339
          %v1432 = vpack.c.b16 %v1344, %v1342
          %v1433 = vpack.c.b16 %v1345, %v1343
          %v1434 = vpack.c.b16 %v1348, %v1346
          %v1435 = vpack.c.b16 %v1349, %v1347
          %v1436 = vpack.c.b16 %v1352, %v1350
          %v1437 = vpack.c.b16 %v1353, %v1351
          %v1438 = vpack.c.b16 %v1356, %v1354
          %v1439 = vpack.c.b16 %v1357, %v1355
          %v1440 = vpack.c.b16 %v1360, %v1358
          %v1441 = vpack.c.b16 %v1361, %v1359
          %v1442 = vpack.c.b16 %v1364, %v1362
          %v1443 = vpack.c.b16 %v1365, %v1363
          %v1444 = vpack.c.b16 %v1368, %v1366
          %v1445 = vpack.c.b16 %v1369, %v1367
          %v1446 = vpack.c.b16 %v1372, %v1370
          %v1447 = vpack.c.b16 %v1373, %v1371
          %v1448 = vpack.c.b16 %v1376, %v1374
          %v1449 = vpack.c.b16 %v1377, %v1375
          %v1450 = vpack.c.b16 %v1380, %v1378
          %v1451 = vpack.c.b16 %v1381, %v1379
          %v1452 = vpack.c.b16 %v1384, %v1382
          %v1453 = vpack.c.b16 %v1385, %v1383
          %v1454 = vpack.c.b16 %v1388, %v1386
          %v1455 = vpack.c.b16 %v1389, %v1387
          %v1456 = vpack.c.b16 %v1392, %v1390
          %v1457 = vpack.c.b16 %v1393, %v1391
          %1522 = vmatprep.subr.bf16.mxu0 %v1409
          %1523 = vmatpush1.bf16.msra.mxu0 %v1408
          %1524 = vmatprep.subr.bf16.mxu0 %v1407
          %1525 = vmatpush1.bf16.msra.mxu0 %v1406
          %1526 = vmatprep.subr.bf16.mxu0 %v1405
          %1527 = vmatpush1.bf16.msra.mxu0 %v1404
          %1528 = vmatprep.subr.bf16.mxu0 %v1403
          %1529 = vmatpush1.bf16.msra.mxu0 %v1402
          %1530 = vmatprep.subr.bf16.mxu0 %v1401
          %1531 = vmatpush1.bf16.msra.mxu0 %v1400
          %1532 = vmatprep.subr.bf16.mxu0 %v1399
          %1533 = vmatpush1.bf16.msra.mxu0 %v1398
          %1534 = vmatprep.subr.bf16.mxu0 %v1397
          %1535 = vmatpush1.bf16.msra.mxu0 %v1396
          %1536 = vmatprep.subr.bf16.mxu0 %v1395
          %1537 = vmatpush1.bf16.msra.mxu0 %v1394
          %1538 = vmatprep.subr.bf16.mxu0 %v1425
          %1539 = vmatpush2.bf16.msra.mxu0 %v1424
          %1540 = vmatprep.subr.bf16.mxu0 %v1423
          %1541 = vmatpush2.bf16.msra.mxu0 %v1422
          %1542 = vmatprep.subr.bf16.mxu0 %v1421
          %1543 = vmatpush2.bf16.msra.mxu0 %v1420
          %1544 = vmatprep.subr.bf16.mxu0 %v1419
          %1545 = vmatpush2.bf16.msra.mxu0 %v1418
          %1546 = vmatprep.subr.bf16.mxu0 %v1417
          %1547 = vmatpush2.bf16.msra.mxu0 %v1416
          %1548 = vmatprep.subr.bf16.mxu0 %v1415
          %1549 = vmatpush2.bf16.msra.mxu0 %v1414
          %1550 = vmatprep.subr.bf16.mxu0 %v1413
          %1551 = vmatpush2.bf16.msra.mxu0 %v1412
          %1552 = vmatprep.subr.bf16.mxu0 %v1411
          %1553 = vmatpush2.bf16.msra.mxu0 %v1410
          %1554 = vmatprep.mubr.bf16.mxu0 %v1123
          %1555 = vmatmul.mubr.bf16.gmra.mxu0 %v1122
          %v1556 = vpop.f32.mrf.mxu0
          %v1557 = vadd.f32 %v1195, %v1556
          %v1558 = vpop.f32.mrf.mxu0
          %v1559 = vadd.f32 %v1199, %v1558
          %v1560 = vpop.f32.mrf.mxu0
          %v1561 = vpop.f32.mrf.mxu0
          %1562 = vdwg.mxu0
          %1563 = vmatprep.subr.bf16.mxu0 %v1441
          %1564 = vmatpush1.bf16.msra.mxu0 %v1440
          %1565 = vmatprep.subr.bf16.mxu0 %v1439
          %1566 = vmatpush1.bf16.msra.mxu0 %v1438
          %1567 = vmatprep.subr.bf16.mxu0 %v1437
          %1568 = vmatpush1.bf16.msra.mxu0 %v1436
          %1569 = vmatprep.subr.bf16.mxu0 %v1435
          %1570 = vmatpush1.bf16.msra.mxu0 %v1434
          %1571 = vmatprep.subr.bf16.mxu0 %v1433
          %1572 = vmatpush1.bf16.msra.mxu0 %v1432
          %1573 = vmatprep.subr.bf16.mxu0 %v1431
          %1574 = vmatpush1.bf16.msra.mxu0 %v1430
          %1575 = vmatprep.subr.bf16.mxu0 %v1429
          %1576 = vmatpush1.bf16.msra.mxu0 %v1428
          %1577 = vmatprep.subr.bf16.mxu0 %v1427
          %1578 = vmatpush1.bf16.msra.mxu0 %v1426
          %1579 = vmatprep.subr.bf16.mxu0 %v1457
          %1580 = vmatpush2.bf16.msra.mxu0 %v1456
          %1581 = vmatprep.subr.bf16.mxu0 %v1455
          %1582 = vmatpush2.bf16.msra.mxu0 %v1454
          %1583 = vmatprep.subr.bf16.mxu0 %v1453
          %1584 = vmatpush2.bf16.msra.mxu0 %v1452
          %1585 = vmatprep.subr.bf16.mxu0 %v1451
          %1586 = vmatpush2.bf16.msra.mxu0 %v1450
          %1587 = vmatprep.subr.bf16.mxu0 %v1449
          %1588 = vmatpush2.bf16.msra.mxu0 %v1448
          %1589 = vmatprep.subr.bf16.mxu0 %v1447
          %1590 = vmatpush2.bf16.msra.mxu0 %v1446
          %1591 = vmatprep.subr.bf16.mxu0 %v1445
          %1592 = vmatpush2.bf16.msra.mxu0 %v1444
          %1593 = vmatprep.subr.bf16.mxu0 %v1443
          %1594 = vmatpush2.bf16.msra.mxu0 %v1442
          %1595 = vmatprep.mubr.bf16.mxu0 %v1125
          %1596 = vmatmul.mubr.bf16.gmra.mxu0 %v1124
          %v1597 = vpop.f32.mrf.mxu0
          %v1598 = vadd.f32 %v1557, %v1597
          %v1599 = vpop.f32.mrf.mxu0
          %v1600 = vadd.f32 %v1559, %v1599
          %v1601 = vpop.f32.mrf.mxu0
          %v1602 = vpop.f32.mrf.mxu0
          %1603 = vdwg.mxu0
          %v1604 = vmax.f32 %v1598, 0.0
          %v1605 = vmax.f32 %v1600, 0.0
          %v1606 = vpack.c.bf16 %v1604, %v1604
          %v1607 = vpack.c.bf16 %v1605, %v1605
          %v1608 = vld [vmem:[#allocation12] sm:$0xf]
          %v1609 = vld [vmem:[#allocation12 + $0x4] sm:$0xf]
          %v1610 = vld [vmem:[#allocation12 + $0x8] sm:$0xf]
          %v1611 = vld [vmem:[#allocation12 + $0xc] sm:$0xf]
          %v1612 = vld [vmem:[#allocation12 + $0x10] sm:$0xf]
          %v1613 = vld [vmem:[#allocation12 + $0x14] sm:$0xf]
          %v1614 = vld [vmem:[#allocation12 + $0x18] sm:$0xf]
          %v1615 = vld [vmem:[#allocation12 + $0x1c] sm:$0xf]
          %v1616 = vld [vmem:[#allocation12 + $0x20] sm:$0xf]
          %v1617 = vld [vmem:[#allocation12 + $0x24] sm:$0xf]
          %v1618 = vld [vmem:[#allocation12 + $0x28] sm:$0xf]
          %v1619 = vld [vmem:[#allocation12 + $0x2c] sm:$0xf]
          %v1620 = vld [vmem:[#allocation12 + $0x30] sm:$0xf]
          %v1621 = vld [vmem:[#allocation12 + $0x34] sm:$0xf]
          %v1622 = vld [vmem:[#allocation12 + $0x38] sm:$0xf]
          %v1623 = vld [vmem:[#allocation12 + $0x3c] sm:$0xf]
          %v1624 = vld [vmem:[#allocation12 + $0x40] sm:$0xf]
          %v1625 = vld [vmem:[#allocation12 + $0x44] sm:$0xf]
          %v1626 = vld [vmem:[#allocation12 + $0x48] sm:$0xf]
          %v1627 = vld [vmem:[#allocation12 + $0x4c] sm:$0xf]
          %v1628 = vld [vmem:[#allocation12 + $0x50] sm:$0xf]
          %v1629 = vld [vmem:[#allocation12 + $0x54] sm:$0xf]
          %v1630 = vld [vmem:[#allocation12 + $0x58] sm:$0xf]
          %v1631 = vld [vmem:[#allocation12 + $0x5c] sm:$0xf]
          %v1632 = vld [vmem:[#allocation12 + $0x60] sm:$0xf]
          %v1633 = vld [vmem:[#allocation12 + $0x64] sm:$0xf]
          %v1634 = vld [vmem:[#allocation12 + $0x68] sm:$0xf]
          %v1635 = vld [vmem:[#allocation12 + $0x6c] sm:$0xf]
          %v1636 = vld [vmem:[#allocation12 + $0x70] sm:$0xf]
          %v1637 = vld [vmem:[#allocation12 + $0x74] sm:$0xf]
          %v1638 = vld [vmem:[#allocation12 + $0x78] sm:$0xf]
          %v1639 = vld [vmem:[#allocation12 + $0x7c] sm:$0xf]
          %v1640 = vld [vmem:[%s7] sm:$0x1]
          %v1642 = vlaneseq
          %v1643 = vshrl.u32 %v1642, 7
          %v1644 = vsub.s32 0, %v1643
          %v1645 = vrot.slane %v1640, %v1644
          %v1679 = vunpack.c.l.b16 %v1608
          %v1680 = vunpack.c.l.b16 %v1609
          %v1681 = vunpack.c.l.b16 %v1610
          %v1682 = vunpack.c.l.b16 %v1611
          %v1683 = vunpack.c.l.b16 %v1612
          %v1684 = vunpack.c.l.b16 %v1613
          %v1685 = vunpack.c.l.b16 %v1614
          %v1686 = vunpack.c.l.b16 %v1615
          %v1687 = vunpack.c.l.b16 %v1616
          %v1688 = vunpack.c.l.b16 %v1617
          %v1689 = vunpack.c.l.b16 %v1618
          %v1690 = vunpack.c.l.b16 %v1619
          %v1691 = vunpack.c.l.b16 %v1620
          %v1692 = vunpack.c.l.b16 %v1621
          %v1693 = vunpack.c.l.b16 %v1622
          %v1694 = vunpack.c.l.b16 %v1623
          %v1695 = vunpack.c.l.b16 %v1624
          %v1696 = vunpack.c.l.b16 %v1625
          %v1697 = vunpack.c.l.b16 %v1626
          %v1698 = vunpack.c.l.b16 %v1627
          %v1699 = vunpack.c.l.b16 %v1628
          %v1700 = vunpack.c.l.b16 %v1629
          %v1701 = vunpack.c.l.b16 %v1630
          %v1702 = vunpack.c.l.b16 %v1631
          %v1703 = vunpack.c.l.b16 %v1632
          %v1704 = vunpack.c.l.b16 %v1633
          %v1705 = vunpack.c.l.b16 %v1634
          %v1706 = vunpack.c.l.b16 %v1635
          %v1707 = vunpack.c.l.b16 %v1636
          %v1708 = vunpack.c.l.b16 %v1637
          %v1709 = vunpack.c.l.b16 %v1638
          %v1710 = vunpack.c.l.b16 %v1639
          %v1711 = vpack.c.b16 %v1680, %v1679
          %v1712 = vpack.c.b16 %v1682, %v1681
          %v1713 = vpack.c.b16 %v1684, %v1683
          %v1714 = vpack.c.b16 %v1686, %v1685
          %v1715 = vpack.c.b16 %v1688, %v1687
          %v1716 = vpack.c.b16 %v1690, %v1689
          %v1717 = vpack.c.b16 %v1692, %v1691
          %v1718 = vpack.c.b16 %v1694, %v1693
          %v1719 = vpack.c.b16 %v1696, %v1695
          %v1720 = vpack.c.b16 %v1698, %v1697
          %v1721 = vpack.c.b16 %v1700, %v1699
          %v1722 = vpack.c.b16 %v1702, %v1701
          %v1723 = vpack.c.b16 %v1704, %v1703
          %v1724 = vpack.c.b16 %v1706, %v1705
          %v1725 = vpack.c.b16 %v1708, %v1707
          %v1726 = vpack.c.b16 %v1710, %v1709
          %1743 = vmatprep.subr.bf16.mxu0 0
          %1744 = vmatpush1.bf16.msra.mxu0 %v1718
          %1745 = vmatprep.subr.bf16.mxu0 0
          %1746 = vmatpush1.bf16.msra.mxu0 %v1717
          %1747 = vmatprep.subr.bf16.mxu0 0
          %1748 = vmatpush1.bf16.msra.mxu0 %v1716
          %1749 = vmatprep.subr.bf16.mxu0 0
          %1750 = vmatpush1.bf16.msra.mxu0 %v1715
          %1751 = vmatprep.subr.bf16.mxu0 0
          %1752 = vmatpush1.bf16.msra.mxu0 %v1714
          %1753 = vmatprep.subr.bf16.mxu0 0
          %1754 = vmatpush1.bf16.msra.mxu0 %v1713
          %1755 = vmatprep.subr.bf16.mxu0 0
          %1756 = vmatpush1.bf16.msra.mxu0 %v1712
          %1757 = vmatprep.subr.bf16.mxu0 0
          %1758 = vmatpush1.bf16.msra.mxu0 %v1711
          %1759 = vmatprep.subr.bf16.mxu0 0
          %1760 = vmatpush2.bf16.msra.mxu0 %v1726
          %1761 = vmatprep.subr.bf16.mxu0 0
          %1762 = vmatpush2.bf16.msra.mxu0 %v1725
          %1763 = vmatprep.subr.bf16.mxu0 0
          %1764 = vmatpush2.bf16.msra.mxu0 %v1724
          %1765 = vmatprep.subr.bf16.mxu0 0
          %1766 = vmatpush2.bf16.msra.mxu0 %v1723
          %1767 = vmatprep.subr.bf16.mxu0 0
          %1768 = vmatpush2.bf16.msra.mxu0 %v1722
          %1769 = vmatprep.subr.bf16.mxu0 0
          %1770 = vmatpush2.bf16.msra.mxu0 %v1721
          %1771 = vmatprep.subr.bf16.mxu0 0
          %1772 = vmatpush2.bf16.msra.mxu0 %v1720
          %1773 = vmatprep.subr.bf16.mxu0 0
          %1774 = vmatpush2.bf16.msra.mxu0 %v1719
          %1775 = vmatprep.mubr.bf16.mxu0 %v1607
          %1776 = vmatmul.mubr.bf16.gmra.mxu0 %v1606
          %v1777 = vpop.f32.mrf.mxu0
          %v1778 = vadd.f32 %v1645, %v1777
          %v1779 = vpop.f32.mrf.mxu0
          %v1780 = vpop.f32.mrf.mxu0
          %v1781 = vpop.f32.mrf.mxu0
          %1782 = vdwg.mxu0
          %v1783 = vmax.f32 %v1778, 0.0
          %v1784 = vpack.c.bf16 %v1783, %v1783
          %v1785 = vld [vmem:[#allocation13] sm:$0xf]
          %v1786 = vld [vmem:[#allocation13 + $0x4] sm:$0xf]
          %v1787 = vld [vmem:[#allocation13 + $0x8] sm:$0xf]
          %v1788 = vld [vmem:[#allocation13 + $0xc] sm:$0xf]
          %v1789 = vld [vmem:[#allocation13 + $0x10] sm:$0xf]
          %v1790 = vld [vmem:[#allocation13 + $0x14] sm:$0xf]
          %v1791 = vld [vmem:[#allocation13 + $0x18] sm:$0xf]
          %v1792 = vld [vmem:[#allocation13 + $0x1c] sm:$0xf]
          %v1793 = vld [vmem:[#allocation13 + $0x20] sm:$0xf]
          %v1794 = vld [vmem:[#allocation13 + $0x24] sm:$0xf]
          %v1795 = vld [vmem:[#allocation13 + $0x28] sm:$0xf]
          %v1796 = vld [vmem:[#allocation13 + $0x2c] sm:$0xf]
          %v1797 = vld [vmem:[#allocation13 + $0x30] sm:$0xf]
          %v1798 = vld [vmem:[#allocation13 + $0x34] sm:$0xf]
          %v1799 = vld [vmem:[#allocation13 + $0x38] sm:$0xf]
          %v1800 = vld [vmem:[#allocation13 + $0x3c] sm:$0xf]
          %v1801 = vld [vmem:[%s9] sm:$0x1]
          %v1803 = vlaneseq
          %v1804 = vshrl.u32 %v1803, 7
          %v1805 = vsub.s32 0, %v1804
          %v1806 = vrot.slane %v1801, %v1805
          %v1824 = vunpack.c.l.b16 %v1785
          %v1825 = vunpack.c.l.b16 %v1786
          %v1826 = vunpack.c.l.b16 %v1787
          %v1827 = vunpack.c.l.b16 %v1788
          %v1828 = vunpack.c.l.b16 %v1789
          %v1829 = vunpack.c.l.b16 %v1790
          %v1830 = vunpack.c.l.b16 %v1791
          %v1831 = vunpack.c.l.b16 %v1792
          %v1832 = vunpack.c.l.b16 %v1793
          %v1833 = vunpack.c.l.b16 %v1794
          %v1834 = vunpack.c.l.b16 %v1795
          %v1835 = vunpack.c.l.b16 %v1796
          %v1836 = vunpack.c.l.b16 %v1797
          %v1837 = vunpack.c.l.b16 %v1798
          %v1838 = vunpack.c.l.b16 %v1799
          %v1839 = vunpack.c.l.b16 %v1800
          %v1840 = vpack.c.b16 %v1825, %v1824
          %v1841 = vpack.c.b16 %v1827, %v1826
          %v1842 = vpack.c.b16 %v1829, %v1828
          %v1843 = vpack.c.b16 %v1831, %v1830
          %v1844 = vpack.c.b16 %v1833, %v1832
          %v1845 = vpack.c.b16 %v1835, %v1834
          %v1846 = vpack.c.b16 %v1837, %v1836
          %v1847 = vpack.c.b16 %v1839, %v1838
          %1856 = vmatprep.subr.bf16.mxu0 0
          %1857 = vmatpush1.bf16.msra.mxu0 %v1847
          %1858 = vmatprep.subr.bf16.mxu0 0
          %1859 = vmatpush1.bf16.msra.mxu0 %v1846
          %1860 = vmatprep.subr.bf16.mxu0 0
          %1861 = vmatpush1.bf16.msra.mxu0 %v1845
          %1862 = vmatprep.subr.bf16.mxu0 0
          %1863 = vmatpush1.bf16.msra.mxu0 %v1844
          %1864 = vmatprep.subr.bf16.mxu0 0
          %1865 = vmatpush1.bf16.msra.mxu0 %v1843
          %1866 = vmatprep.subr.bf16.mxu0 0
          %1867 = vmatpush1.bf16.msra.mxu0 %v1842
          %1868 = vmatprep.subr.bf16.mxu0 0
          %1869 = vmatpush1.bf16.msra.mxu0 %v1841
          %1870 = vmatprep.subr.bf16.mxu0 0
          %1871 = vmatpush1.bf16.msra.mxu0 %v1840
          %1872 = vmatprep.subr.bf16.mxu0 0
          %1873 = vmatpush2.bf16.msra.mxu0 0
          %1874 = vmatprep.subr.bf16.mxu0 0
          %1875 = vmatpush2.bf16.msra.mxu0 0
          %1876 = vmatprep.subr.bf16.mxu0 0
          %1877 = vmatpush2.bf16.msra.mxu0 0
          %1878 = vmatprep.subr.bf16.mxu0 0
          %1879 = vmatpush2.bf16.msra.mxu0 0
          %1880 = vmatprep.subr.bf16.mxu0 0
          %1881 = vmatpush2.bf16.msra.mxu0 0
          %1882 = vmatprep.subr.bf16.mxu0 0
          %1883 = vmatpush2.bf16.msra.mxu0 0
          %1884 = vmatprep.subr.bf16.mxu0 0
          %1885 = vmatpush2.bf16.msra.mxu0 0
          %1886 = vmatprep.subr.bf16.mxu0 0
          %1887 = vmatpush2.bf16.msra.mxu0 0
          %1888 = vmatprep.mubr.bf16.mxu0 0
          %1889 = vmatmul.mubr.bf16.gmra.mxu0 %v1784
          %v1890 = vpop.f32.mrf.mxu0
          %v1891 = vadd.f32 %v1806, %v1890
          %v1892 = vpop.f32.mrf.mxu0
          %v1893 = vpop.f32.mrf.mxu0
          %v1894 = vpop.f32.mrf.mxu0
          %1895 = vdwg.mxu0
          %1896 = vst [vmem:[#allocation15] sm:$0x3] %v1891
        $region112: #{tpu_custom_call.1} parent=51 // pred_fallthru
          _
        // Predicated region
        $region113: #{tpu_custom_call.1} parent=51 // pred_check
          %p1897 = pneg %p217
        $region114: #{tpu_custom_call.1} parent=51 // pred_check_branch
          %1899 = sbr.rel (%p1897) target = $region116
        $region115: #{tpu_custom_call.1} parent=51 // pred_region
          %s1901 = ssub.s32 32, 32
          %1902 = vsyncadd [#allocation9], %s1901
          %s1904 = sshll.u32 [#allocation15], 4
          %s1905 = int_to_ptr.vmem [resolvable:$true] %s1904
          %1907 = dma.vmem_to_hbm [thread:$0]  %s1905, 32, %s10, [#allocation9]
        $region116: #{tpu_custom_call.1} parent=51 // pred_fallthru
          _
        // Predicated region
        $region117: #{tpu_custom_call.1} parent=51 // pred_check
          %p1908 = pneg %p217
        $region118: #{tpu_custom_call.1} parent=51 // pred_check_branch
          %1910 = sbr.rel (%p1908) target = $region120
        $region119: #{tpu_custom_call.1} parent=51 // pred_region
          %1911 = dma.done [#allocation9], 32
        $region120: #{tpu_custom_call.1} parent=51 // pred_fallthru
          _
      $region52: #{tpu_custom_call.1} parent=5 // pred_fallthru
        _
      %p1912 = scmp.le.s32.totalorder 2, %s26
      // Predicated region
      $region121: #{tpu_custom_call.1} parent=5 // pred_check
        %p1913 = pneg %p1912
      $region122: #{tpu_custom_call.1} parent=5 // pred_check_branch
        %1915 = sbr.rel (%p1913) target = $region124
      $region123: #{tpu_custom_call.1} parent=5 // pred_region
        %s1916 = ssub.s32 %s26, 2
      $region124: #{tpu_custom_call.1} parent=5 // pred_fallthru
        _
    $region6: #{tpu_custom_call.1} parent=1 // loop_footer
      %s30 = sadd.s32 1, %s26
    $region7: #{tpu_custom_call.1} parent=1 // loop_footer_branch
      %25 = sbr.rel target = $region3
    $region8: #{tpu_custom_call.1} parent=1 // loop_exit
      _
    %1917 = vsyncpa [#allocation8], 1
    %s1918 = scalar_lea.sflag [#allocation8], 1
    %1919 = vsyncpa %s1918, 1
    %1920 = vsyncpa [#allocation11], 1
    %1921 = vsyncpa [#allocation14], 1
    %1922 = vsyncpa [#allocation9], 1
    %s1923 = scalar_lea.sflag [#allocation9], 1
    %1924 = vsyncpa %s1923, 1
  %1925 = vsyncmov [#allocation4]
  %s1926 = vpop.sfrf %1925
  %p1927 = scmp.eq.s32.totalorder %s1926, 0
  %p1928 = pneg %p1927
  %1930 = shalt.err (%p1928)
  %s1931 = scalar_lea.sflag [#allocation4], 1
  %1932 = vsyncmov %s1931
  %s1933 = vpop.sfrf %1932
  %p1934 = scmp.eq.s32.totalorder %s1933, 0
  %p1935 = pneg %p1934
  %1937 = shalt.err (%p1935)
  %s1938 = scalar_lea.sflag [#allocation4], 2
  %1939 = vsyncmov %s1938
  %s1940 = vpop.sfrf %1939
  %p1941 = scmp.eq.s32.totalorder %s1940, 0
  %p1942 = pneg %p1941
  %1944 = shalt.err (%p1942)
  %s1945 = scalar_lea.sflag [#allocation4], 3
  %1946 = vsyncmov %s1945
  %s1947 = vpop.sfrf %1946
  %p1948 = scmp.eq.s32.totalorder %s1947, 0
  %p1949 = pneg %p1948
  %1951 = shalt.err (%p1949)
  %s1952 = scalar_lea.sflag [#allocation4], 4
  %1953 = vsyncmov %s1952
  %s1954 = vpop.sfrf %1953
  %p1955 = scmp.eq.s32.totalorder %s1954, 0
  %p1956 = pneg %p1955
  %1958 = shalt.err (%p1956)
  %s1959 = scalar_lea.sflag [#allocation4], 5
  %1960 = vsyncmov %s1959
  %s1961 = vpop.sfrf %1960
  %p1962 = scmp.eq.s32.totalorder %s1961, 0
  %p1963 = pneg %p1962
  %1965 = shalt.err (%p1963)
  %s1966 = scalar_lea.sflag [#allocation4], 6
  %1967 = vsyncmov %s1966
  %s1968 = vpop.sfrf %1967
  %p1969 = scmp.eq.s32.totalorder %s1968, 0
  %p1970 = pneg %p1969
  %1972 = shalt.err (%p1970)
  %s1973 = scalar_lea.sflag [#allocation4], 7
  %1974 = vsyncmov %s1973
  %s1975 = vpop.sfrf %1974
  %p1976 = scmp.eq.s32.totalorder %s1975, 0
  %p1977 = pneg %p1976
  %1979 = shalt.err (%p1977)

</llo_original>
